<compile_context>
chip_gen: v6e
topology: v6e:2x2x1
jax: 0.10.0
libtpu: 0.0.40
codegen_flags: <defaults>
</compile_context>

<pallas_src>
import numpy as np
import jax
import jax.numpy as jnp
from jax.experimental import pallas as pl
from jax.experimental.pallas import tpu as pltpu


# ------------------------------ fused kernel -------------------------------

def fused_forward_kernel(x_ref, w1e_ref, b1_ref, w2e_ref, b2_ref,
                         fw1_ref, fb1_ref, fw2_ref, fb2_ref,
                         fw3_ref, fb3_ref, o_ref):
    f32 = jnp.float32
    x = x_ref[...]                                                  # (TB, 128)

    # conv1 (3x3, 1->32) as a single MXU matmul against the Toeplitz-expanded
    # weight. Column layout: q*512 + (hp*4+wp)*32 + c, where q indexes the
    # position inside the 2x2 pool window of pool cell (hp, wp).
    y1 = jnp.dot(x, w1e_ref[...], preferred_element_type=f32)       # (TB, 2048)
    # 2x2 maxpool == max over the 4 contiguous 512-lane groups (q-major).
    p1 = jnp.maximum(jnp.maximum(y1[:, 0:512], y1[:, 512:1024]),
                     jnp.maximum(y1[:, 1024:1536], y1[:, 1536:2048]))
    p1 = jnp.maximum(p1 + b1_ref[...], 0.0)                          # (TB, 512)

    # conv2 (3x3, 32->64) fused with its 2x2 maxpool: one (TB,512)@(512,256)
    # matmul with columns grouped as pos*64 + cout; pool = max over 4 groups.
    z = jnp.dot(p1, w2e_ref[...], preferred_element_type=f32)        # (TB, 256)
    feat = jnp.maximum(jnp.maximum(z[:, 0:64], z[:, 64:128]),
                       jnp.maximum(z[:, 128:192], z[:, 192:256]))     # (TB, 64)
    feat = jnp.maximum(feat + b2_ref[...], 0.0)                       # == Flatten()

    # MLP head (fc2/fc3 zero-padded to 128 lanes -> all stores lane-dense).
    h = jnp.maximum(jnp.dot(feat, fw1_ref[...], preferred_element_type=f32)
                    + fb1_ref[...], 0.0)                              # (TB, 128)
    h = jnp.maximum(jnp.dot(h, fw2_ref[...], preferred_element_type=f32)
                    + fb2_ref[...], 0.0)                              # cols >= 50 are 0
    o_ref[...] = jnp.tanh(jnp.dot(h, fw3_ref[...], preferred_element_type=f32)
                          + fb3_ref[...])                             # cols >= 25 are 0


# ------------------------- host-side weight re-layout ------------------------

def _expand_conv1(conv1_w):
    """(32,1,3,3) conv1 weight -> (128, 2048) matmul weight.

    Row    = h*10 + w of the flattened 10x10 input (rows >= 100 are zero pad).
    Column = q*512 + (hp*4+wp)*32 + c with q = qi*2 + qj the position inside
             the 2x2 pool cell (hp, wp); conv1 output pos = (2hp+qi, 2wp+qj).
    """
    rows, cols, taps = [], [], []
    for hp in range(4):
        for wp in range(4):
            for qi in range(2):
                for qj in range(2):
                    oh, ow = 2 * hp + qi, 2 * wp + qj
                    base = (qi * 2 + qj) * 512 + (hp * 4 + wp) * 32
                    for i in range(3):
                        for j in range(3):
                            rows.append((oh + i) * 10 + (ow + j))
                            cols.append(base)
                            taps.append(i * 3 + j)
    rows = np.asarray(rows, np.int32)[:, None]                        # (576, 1)
    cols = np.asarray(cols, np.int32)[:, None] + np.arange(32, dtype=np.int32)
    vals = conv1_w.reshape(32, 9).T[np.asarray(taps, np.int32)]       # (576, 32)
    return jnp.zeros((128, 2048), jnp.float32).at[rows, cols].set(vals)


def _expand_conv2(conv2_w):
    """(64,32,3,3) conv2 weight -> (512, 256) matmul weight.

    Row    = (hp*4 + wp)*32 + cin  (layout of the pooled conv1 activation).
    Column = (ho*2 + wo)*64 + cout (one 64-lane group per conv2 output pos).
    """
    w_ij = jnp.transpose(conv2_w, (2, 3, 1, 0)).reshape(9, 32, 64)    # tap,cin,cout
    rows, cols, taps = [], [], []
    for ho in range(2):
        for wo in range(2):
            for i in range(3):
                for j in range(3):
                    rows.append(((ho + i) * 4 + (wo + j)) * 32)
                    cols.append((ho * 2 + wo) * 64)
                    taps.append(i * 3 + j)
    rr = np.asarray(rows, np.int32)[:, None, None] + np.arange(32, dtype=np.int32)[None, :, None]
    cc = np.asarray(cols, np.int32)[:, None, None] + np.arange(64, dtype=np.int32)[None, None, :]
    vals = w_ij[np.asarray(taps, np.int32)]                           # (36, 32, 64)
    return jnp.zeros((512, 256), jnp.float32).at[rr, cc].set(vals)


def _pad2(a, shape):
    out = jnp.zeros(shape, jnp.float32)
    return out.at[:a.shape[0], :a.shape[1]].set(a.astype(jnp.float32))


def _pick_batch_tile(B):
    rup8 = lambda n: -(-n // 8) * 8
    if B <= 16:
        return rup8(max(B, 1))
    # keep >= 2 grid steps when the batch allows it (v7x: 2 TCs); cap tile at 128
    return min(128, rup8(-(-B // 2)))


# ------------------------------ host wrapper --------------------------------

def regression_model_forward(x_nchw, params):
    B, C, H, W = x_nchw.shape
    assert (C, H, W) == (1, 10, 10), "model geometry requires (1, 10, 10) input"
    f32 = jnp.float32

    TB = _pick_batch_tile(B)
    Bp = -(-B // TB) * TB

    # Flatten input to (B, 100) (row = h*10 + w) and zero-pad to lane-dense (Bp, 128).
    x = jnp.zeros((Bp, 128), f32).at[:B, :100].set(
        x_nchw.reshape(B, 100).astype(f32))

    # Lane-dense, matmul-friendly parameter layouts (host touches params only).
    w1e = _expand_conv1(params['conv1_w'].astype(f32))                    # (128, 2048)
    b1 = jnp.tile(params['conv1_b'].reshape(1, 32).astype(f32), (1, 16))  # (1, 512)
    w2e = _expand_conv2(params['conv2_w'].astype(f32))                    # (512, 256)
    b2 = params['conv2_b'].reshape(1, 64).astype(f32)
    fw1 = params['fc1_w'].astype(f32)                                     # (64, 128)
    fb1 = params['fc1_b'].reshape(1, 128).astype(f32)
    fw2 = _pad2(params['fc2_w'], (128, 128))                              # (128,50) -> padded
    fb2 = _pad2(params['fc2_b'].reshape(1, 50), (1, 128))
    fw3 = _pad2(params['fc3_w'], (128, 128))                              # (50,25) -> padded
    fb3 = _pad2(params['fc3_b'].reshape(1, 25), (1, 128))

    const = lambda shape: pl.BlockSpec(shape, lambda i: (0, 0))

    out = pl.pallas_call(
        fused_forward_kernel,
        out_shape=jax.ShapeDtypeStruct((Bp, 128), f32),
        grid=(Bp // TB,),
        in_specs=[
            pl.BlockSpec((TB, 128), lambda i: (i, 0)),
            const((128, 2048)), const((1, 512)),
            const((512, 256)), const((1, 64)),
            const((64, 128)), const((1, 128)),
            const((128, 128)), const((1, 128)),
            const((128, 128)), const((1, 128)),
        ],
        out_specs=pl.BlockSpec((TB, 128), lambda i: (i, 0)),
        compiler_params=pltpu.CompilerParams(
            dimension_semantics=("parallel",),
            vmem_limit_bytes=32 * 1024 * 1024),
    )(x, w1e, b1, w2e, b2, fw1, fb1, fw2, fb2, fw3, fb3)
    return out[:B, :25]


# --------------------------- deterministic params ---------------------------

def init_params(key):
    ks = jax.random.split(key, 10)

    def u(k, shape, fan_in):
        bound = 1.0 / jnp.sqrt(jnp.float32(fan_in))
        return jax.random.uniform(k, shape, jnp.float32, -bound, bound)

    p = {}
    p['conv1_w'] = u(ks[0], (32, 1, 3, 3), 1 * 9)       # OIHW (torch layout)
    p['conv1_b'] = u(ks[1], (32,), 1 * 9)
    p['conv2_w'] = u(ks[2], (64, 32, 3, 3), 32 * 9)
    p['conv2_b'] = u(ks[3], (64,), 32 * 9)
    p['fc1_w'] = u(ks[4], (64, 128), 64)                # stored as (in, out)
    p['fc1_b'] = u(ks[5], (1, 128), 64)
    p['fc2_w'] = u(ks[6], (128, 50), 128)
    p['fc2_b'] = u(ks[7], (1, 50), 128)
    p['fc3_w'] = u(ks[8], (50, 25), 50)
    p['fc3_b'] = u(ks[9], (1, 25), 50)
    return p


# ------------------------- pure-JAX reference check -------------------------

def reference_forward(x_nchw, p):
    hi = jax.lax.Precision.HIGHEST

    def conv(x, w, b):
        y = jax.lax.conv_general_dilated(
            x, w, (1, 1), 'VALID',
            dimension_numbers=('NCHW', 'OIHW', 'NCHW'), precision=hi)
        return y + b.reshape(1, -1, 1, 1)

    def maxpool2(x):
        return jax.lax.reduce_window(x, -jnp.inf, jax.lax.max,
                                     (1, 1, 2, 2), (1, 1, 2, 2), 'VALID')

    x = jax.nn.relu(maxpool2(conv(x_nchw, p['conv1_w'], p['conv1_b'])))
    x = jax.nn.relu(maxpool2(conv(x, p['conv2_w'], p['conv2_b'])))
    x = x.reshape(x.shape[0], -1)
    x = jax.nn.relu(jnp.dot(x, p['fc1_w'], precision=hi) + p['fc1_b'].reshape(-1))
    x = jax.nn.relu(jnp.dot(x, p['fc2_w'], precision=hi) + p['fc2_b'].reshape(-1))
    return jnp.tanh(jnp.dot(x, p['fc3_w'], precision=hi) + p['fc3_b'].reshape(-1))


if __name__ == "__main__":
    # Spatial size 10x10 so conv(3)->pool(2)->conv(3)->pool(2) yields 1x1x64
    # features, matching fc1's in_features = 64.
    key = jax.random.PRNGKey(0)
    x = jax.random.normal(key, (2, 1, 10, 10), jnp.float32)   # NCHW like PyTorch
    params = init_params(jax.random.PRNGKey(42))

    fwd = jax.jit(regression_model_forward)
    out = jax.block_until_ready(fwd(x, params))

    ref = reference_forward(x, params)
    assert out.shape == (2, 25), out.shape
    err = jnp.max(jnp.abs(out - ref))
    assert jnp.allclose(out, ref, atol=5e-3, rtol=1e-3), f"max abs err = {err}"
    print("KERNEL_OK")
</pallas_src>

<mosaic_0001>
module attributes {stable_mosaic.version = 11 : i64} {
  func.func @fused_forward_kernel(%arg0: i32, %arg1: memref<8x128xf32, #tpu.memory_space<vmem>>, %arg2: memref<128x2048xf32, #tpu.memory_space<vmem>>, %arg3: memref<1x512xf32, #tpu.memory_space<vmem>>, %arg4: memref<512x256xf32, #tpu.memory_space<vmem>>, %arg5: memref<1x64xf32, #tpu.memory_space<vmem>>, %arg6: memref<64x128xf32, #tpu.memory_space<vmem>>, %arg7: memref<1x128xf32, #tpu.memory_space<vmem>>, %arg8: memref<128x128xf32, #tpu.memory_space<vmem>>, %arg9: memref<1x128xf32, #tpu.memory_space<vmem>>, %arg10: memref<128x128xf32, #tpu.memory_space<vmem>>, %arg11: memref<1x128xf32, #tpu.memory_space<vmem>>, %arg12: memref<8x128xf32, #tpu.memory_space<vmem>>) attributes {dimension_semantics = [#tpu.dimension_semantics<parallel>], iteration_bounds = array<i64: 1>, scalar_prefetch = 0 : i64, scratch_operands = 0 : i64, tpu.core_type = #tpu.core_type<tc>, window_params = [{transform_indices = @transform_0, window_bounds = array<i64: 8, 128>}, {pipeline_mode = #tpu.pipeline_mode<synchronous>, transform_indices = @transform_1, window_bounds = array<i64: 128, 2048>}, {pipeline_mode = #tpu.pipeline_mode<synchronous>, transform_indices = @transform_2, window_bounds = array<i64: 1, 512>}, {pipeline_mode = #tpu.pipeline_mode<synchronous>, transform_indices = @transform_3, window_bounds = array<i64: 512, 256>}, {pipeline_mode = #tpu.pipeline_mode<synchronous>, transform_indices = @transform_4, window_bounds = array<i64: 1, 64>}, {pipeline_mode = #tpu.pipeline_mode<synchronous>, transform_indices = @transform_5, window_bounds = array<i64: 64, 128>}, {pipeline_mode = #tpu.pipeline_mode<synchronous>, transform_indices = @transform_6, window_bounds = array<i64: 1, 128>}, {pipeline_mode = #tpu.pipeline_mode<synchronous>, transform_indices = @transform_7, window_bounds = array<i64: 128, 128>}, {pipeline_mode = #tpu.pipeline_mode<synchronous>, transform_indices = @transform_8, window_bounds = array<i64: 1, 128>}, {pipeline_mode = #tpu.pipeline_mode<synchronous>, transform_indices = @transform_9, window_bounds = array<i64: 128, 128>}, {pipeline_mode = #tpu.pipeline_mode<synchronous>, transform_indices = @transform_10, window_bounds = array<i64: 1, 128>}, {transform_indices = @transform_11, window_bounds = array<i64: 8, 128>}]} {
    %c0 = arith.constant 0 : index
    %c0_0 = arith.constant 0 : index
    %0 = vector.load %arg1[%c0, %c0_0] : memref<8x128xf32, #tpu.memory_space<vmem>>, vector<8x128xf32>
    %c0_1 = arith.constant 0 : index
    %c0_2 = arith.constant 0 : index
    %1 = vector.load %arg2[%c0_1, %c0_2] : memref<128x2048xf32, #tpu.memory_space<vmem>>, vector<128x2048xf32>
    %cst = arith.constant dense<0.000000e+00> : vector<8x2048xf32>
    %2 = tpu.matmul %0, %1, %cst {dimension_numbers = #tpu.dot_dimension_numbers<[1], [0], [0], [1], [0, 0, 1, 1], [], []>} : vector<8x128xf32>, vector<128x2048xf32>, vector<8x2048xf32> -> vector<8x2048xf32>
    %3 = vector.extract_strided_slice %2 {offsets = [0, 0], sizes = [8, 512], strides = [1, 1]} : vector<8x2048xf32> to vector<8x512xf32>
    %4 = vector.extract_strided_slice %2 {offsets = [0, 512], sizes = [8, 512], strides = [1, 1]} : vector<8x2048xf32> to vector<8x512xf32>
    %5 = arith.maximumf %3, %4 : vector<8x512xf32>
    %6 = vector.extract_strided_slice %2 {offsets = [0, 1024], sizes = [8, 512], strides = [1, 1]} : vector<8x2048xf32> to vector<8x512xf32>
    %7 = vector.extract_strided_slice %2 {offsets = [0, 1536], sizes = [8, 512], strides = [1, 1]} : vector<8x2048xf32> to vector<8x512xf32>
    %8 = arith.maximumf %6, %7 : vector<8x512xf32>
    %9 = arith.maximumf %5, %8 : vector<8x512xf32>
    %c0_3 = arith.constant 0 : index
    %c0_4 = arith.constant 0 : index
    %10 = vector.load %arg3[%c0_3, %c0_4] : memref<1x512xf32, #tpu.memory_space<vmem>>, vector<1x512xf32>
    %11 = vector.broadcast %10 : vector<1x512xf32> to vector<8x512xf32>
    %12 = arith.addf %9, %11 : vector<8x512xf32>
    %cst_5 = arith.constant 0.000000e+00 : f32
    %13 = vector.broadcast %cst_5 : f32 to vector<8x512xf32>
    %14 = arith.maximumf %12, %13 : vector<8x512xf32>
    %c0_6 = arith.constant 0 : index
    %c0_7 = arith.constant 0 : index
    %15 = vector.load %arg4[%c0_6, %c0_7] : memref<512x256xf32, #tpu.memory_space<vmem>>, vector<512x256xf32>
    %cst_8 = arith.constant dense<0.000000e+00> : vector<8x256xf32>
    %16 = tpu.matmul %14, %15, %cst_8 {dimension_numbers = #tpu.dot_dimension_numbers<[1], [0], [0], [1], [0, 0, 1, 1], [], []>} : vector<8x512xf32>, vector<512x256xf32>, vector<8x256xf32> -> vector<8x256xf32>
    %17 = vector.extract_strided_slice %16 {offsets = [0, 0], sizes = [8, 64], strides = [1, 1]} : vector<8x256xf32> to vector<8x64xf32>
    %18 = vector.extract_strided_slice %16 {offsets = [0, 64], sizes = [8, 64], strides = [1, 1]} : vector<8x256xf32> to vector<8x64xf32>
    %19 = arith.maximumf %17, %18 : vector<8x64xf32>
    %20 = vector.extract_strided_slice %16 {offsets = [0, 128], sizes = [8, 64], strides = [1, 1]} : vector<8x256xf32> to vector<8x64xf32>
    %21 = vector.extract_strided_slice %16 {offsets = [0, 192], sizes = [8, 64], strides = [1, 1]} : vector<8x256xf32> to vector<8x64xf32>
    %22 = arith.maximumf %20, %21 : vector<8x64xf32>
    %23 = arith.maximumf %19, %22 : vector<8x64xf32>
    %c0_9 = arith.constant 0 : index
    %c0_10 = arith.constant 0 : index
    %24 = vector.load %arg5[%c0_9, %c0_10] : memref<1x64xf32, #tpu.memory_space<vmem>>, vector<1x64xf32>
    %25 = vector.broadcast %24 : vector<1x64xf32> to vector<8x64xf32>
    %26 = arith.addf %23, %25 : vector<8x64xf32>
    %cst_11 = arith.constant 0.000000e+00 : f32
    %27 = vector.broadcast %cst_11 : f32 to vector<8x64xf32>
    %28 = arith.maximumf %26, %27 : vector<8x64xf32>
    %c0_12 = arith.constant 0 : index
    %c0_13 = arith.constant 0 : index
    %29 = vector.load %arg6[%c0_12, %c0_13] : memref<64x128xf32, #tpu.memory_space<vmem>>, vector<64x128xf32>
    %cst_14 = arith.constant dense<0.000000e+00> : vector<8x128xf32>
    %30 = tpu.matmul %28, %29, %cst_14 {dimension_numbers = #tpu.dot_dimension_numbers<[1], [0], [0], [1], [0, 0, 1, 1], [], []>} : vector<8x64xf32>, vector<64x128xf32>, vector<8x128xf32> -> vector<8x128xf32>
    %c0_15 = arith.constant 0 : index
    %c0_16 = arith.constant 0 : index
    %31 = vector.load %arg7[%c0_15, %c0_16] : memref<1x128xf32, #tpu.memory_space<vmem>>, vector<1x128xf32>
    %32 = vector.broadcast %31 : vector<1x128xf32> to vector<8x128xf32>
    %33 = arith.addf %30, %32 : vector<8x128xf32>
    %cst_17 = arith.constant 0.000000e+00 : f32
    %34 = vector.broadcast %cst_17 : f32 to vector<8x128xf32>
    %35 = arith.maximumf %33, %34 : vector<8x128xf32>
    %c0_18 = arith.constant 0 : index
    %c0_19 = arith.constant 0 : index
    %36 = vector.load %arg8[%c0_18, %c0_19] : memref<128x128xf32, #tpu.memory_space<vmem>>, vector<128x128xf32>
    %cst_20 = arith.constant dense<0.000000e+00> : vector<8x128xf32>
    %37 = tpu.matmul %35, %36, %cst_20 {dimension_numbers = #tpu.dot_dimension_numbers<[1], [0], [0], [1], [0, 0, 1, 1], [], []>} : vector<8x128xf32>, vector<128x128xf32>, vector<8x128xf32> -> vector<8x128xf32>
    %c0_21 = arith.constant 0 : index
    %c0_22 = arith.constant 0 : index
    %38 = vector.load %arg9[%c0_21, %c0_22] : memref<1x128xf32, #tpu.memory_space<vmem>>, vector<1x128xf32>
    %39 = vector.broadcast %38 : vector<1x128xf32> to vector<8x128xf32>
    %40 = arith.addf %37, %39 : vector<8x128xf32>
    %cst_23 = arith.constant 0.000000e+00 : f32
    %41 = vector.broadcast %cst_23 : f32 to vector<8x128xf32>
    %42 = arith.maximumf %40, %41 : vector<8x128xf32>
    %c0_24 = arith.constant 0 : index
    %c0_25 = arith.constant 0 : index
    %43 = vector.load %arg10[%c0_24, %c0_25] : memref<128x128xf32, #tpu.memory_space<vmem>>, vector<128x128xf32>
    %cst_26 = arith.constant dense<0.000000e+00> : vector<8x128xf32>
    %44 = tpu.matmul %42, %43, %cst_26 {dimension_numbers = #tpu.dot_dimension_numbers<[1], [0], [0], [1], [0, 0, 1, 1], [], []>} : vector<8x128xf32>, vector<128x128xf32>, vector<8x128xf32> -> vector<8x128xf32>
    %c0_27 = arith.constant 0 : index
    %c0_28 = arith.constant 0 : index
    %45 = vector.load %arg11[%c0_27, %c0_28] : memref<1x128xf32, #tpu.memory_space<vmem>>, vector<1x128xf32>
    %46 = vector.broadcast %45 : vector<1x128xf32> to vector<8x128xf32>
    %47 = arith.addf %44, %46 : vector<8x128xf32>
    %48 = math.tanh %47 : vector<8x128xf32>
    %c0_29 = arith.constant 0 : index
    %c0_30 = arith.constant 0 : index
    %49 = vector.load %arg12[%c0_29, %c0_30] : memref<8x128xf32, #tpu.memory_space<vmem>>, vector<8x128xf32>
    tpu.vector_store %arg12[%c0_29, %c0_30], %48 {strides = array<i32>} : memref<8x128xf32, #tpu.memory_space<vmem>>, vector<8x128xf32>,
    return
  }
  func.func @transform_0(%arg0: i32) -> (i32, i32) {
    %c0_i32 = arith.constant 0 : i32
    %c0_i32_0 = arith.constant 0 : i32
    return %arg0, %c0_i32 : i32, i32
  }
  func.func @transform_1(%arg0: i32) -> (i32, i32) {
    %c0_i32 = arith.constant 0 : i32
    %c0_i32_0 = arith.constant 0 : i32
    %c0_i32_1 = arith.constant 0 : i32
    return %c0_i32, %c0_i32_0 : i32, i32
  }
  func.func @transform_2(%arg0: i32) -> (i32, i32) {
    %c0_i32 = arith.constant 0 : i32
    %c0_i32_0 = arith.constant 0 : i32
    %c0_i32_1 = arith.constant 0 : i32
    return %c0_i32, %c0_i32_0 : i32, i32
  }
  func.func @transform_3(%arg0: i32) -> (i32, i32) {
    %c0_i32 = arith.constant 0 : i32
    %c0_i32_0 = arith.constant 0 : i32
    %c0_i32_1 = arith.constant 0 : i32
    return %c0_i32, %c0_i32_0 : i32, i32
  }
  func.func @transform_4(%arg0: i32) -> (i32, i32) {
    %c0_i32 = arith.constant 0 : i32
    %c0_i32_0 = arith.constant 0 : i32
    %c0_i32_1 = arith.constant 0 : i32
    return %c0_i32, %c0_i32_0 : i32, i32
  }
  func.func @transform_5(%arg0: i32) -> (i32, i32) {
    %c0_i32 = arith.constant 0 : i32
    %c0_i32_0 = arith.constant 0 : i32
    %c0_i32_1 = arith.constant 0 : i32
    return %c0_i32, %c0_i32_0 : i32, i32
  }
  func.func @transform_6(%arg0: i32) -> (i32, i32) {
    %c0_i32 = arith.constant 0 : i32
    %c0_i32_0 = arith.constant 0 : i32
    %c0_i32_1 = arith.constant 0 : i32
    return %c0_i32, %c0_i32_0 : i32, i32
  }
  func.func @transform_7(%arg0: i32) -> (i32, i32) {
    %c0_i32 = arith.constant 0 : i32
    %c0_i32_0 = arith.constant 0 : i32
    %c0_i32_1 = arith.constant 0 : i32
    return %c0_i32, %c0_i32_0 : i32, i32
  }
  func.func @transform_8(%arg0: i32) -> (i32, i32) {
    %c0_i32 = arith.constant 0 : i32
    %c0_i32_0 = arith.constant 0 : i32
    %c0_i32_1 = arith.constant 0 : i32
    return %c0_i32, %c0_i32_0 : i32, i32
  }
  func.func @transform_9(%arg0: i32) -> (i32, i32) {
    %c0_i32 = arith.constant 0 : i32
    %c0_i32_0 = arith.constant 0 : i32
    %c0_i32_1 = arith.constant 0 : i32
    return %c0_i32, %c0_i32_0 : i32, i32
  }
  func.func @transform_10(%arg0: i32) -> (i32, i32) {
    %c0_i32 = arith.constant 0 : i32
    %c0_i32_0 = arith.constant 0 : i32
    %c0_i32_1 = arith.constant 0 : i32
    return %c0_i32, %c0_i32_0 : i32, i32
  }
  func.func @transform_11(%arg0: i32) -> (i32, i32) {
    %c0_i32 = arith.constant 0 : i32
    %c0_i32_0 = arith.constant 0 : i32
    return %arg0, %c0_i32 : i32, i32
  }
}

</mosaic_0001>

<llo_original>
// kernel: regression_model_forward.1
$region0: #{regression_model_forward.1}
  #allocation0 [shape = 'u32[]', space=smem, size = 0x4, offset = 0x4, fixed_abs, tag = 'smem constant byte address 0x4 - core index']
  #allocation1 [shape = 'u32[144,128]{1,0:T(1,128)}', space=vmem, size = 0x12000, scoped, tag = 'internal scratch']
  %s0 = inlined_call_operand.vmem [shape: f32[8,128], index: 0, kind: input, shape index: {}]
  %s1 = inlined_call_operand.vmem [shape: f32[128,2048], index: 1, kind: input, shape index: {}]
  %s2 = inlined_call_operand.vmem [shape: f32[1,512], index: 2, kind: input, shape index: {}]
  %s3 = inlined_call_operand.vmem [shape: f32[512,256], index: 3, kind: input, shape index: {}]
  %s4 = inlined_call_operand.vmem [shape: f32[1,64], index: 4, kind: input, shape index: {}]
  %s5 = inlined_call_operand.vmem [shape: f32[64,128], index: 5, kind: input, shape index: {}]
  %s6 = inlined_call_operand.vmem [shape: f32[1,128], index: 6, kind: input, shape index: {}]
  %s7 = inlined_call_operand.vmem [shape: f32[128,128], index: 7, kind: input, shape index: {}]
  %s8 = inlined_call_operand.vmem [shape: f32[1,128], index: 8, kind: input, shape index: {}]
  %s9 = inlined_call_operand.vmem [shape: f32[128,128], index: 9, kind: input, shape index: {}]
  %s10 = inlined_call_operand.vmem [shape: f32[1,128], index: 10, kind: input, shape index: {}]
  %s11 = inlined_call_operand.vmem [shape: f32[8,128], index: 11, kind: output, shape index: {}]
  %s12 = sld [smem:[#allocation0]]
  $region54: #{regression_model_forward.1} parent=0
    _
  %s14 = ssub.s32 1, %s12
  %s15 = scalar_select 0, %s14, %s12
  // Predicated region
  $region2: #{regression_model_forward.1} parent=0 // pred_check
    _
  $region3: #{regression_model_forward.1} parent=0 // pred_check_branch
    %17 = sbr.rel (0) target = $region5
  $region4: #{regression_model_forward.1} parent=0 // pred_region
    _
  $region5: #{regression_model_forward.1} parent=0 // pred_fallthru
    _
  // Predicated region
  $region6: #{regression_model_forward.1} parent=0 // pred_check
    _
  $region7: #{regression_model_forward.1} parent=0 // pred_check_branch
    %19 = sbr.rel (0) target = $region9
  $region8: #{regression_model_forward.1} parent=0 // pred_region
    _
  $region9: #{regression_model_forward.1} parent=0 // pred_fallthru
    _
  // Predicated region
  $region10: #{regression_model_forward.1} parent=0 // pred_check
    _
  $region11: #{regression_model_forward.1} parent=0 // pred_check_branch
    %21 = sbr.rel (0) target = $region13
  $region12: #{regression_model_forward.1} parent=0 // pred_region
    _
  $region13: #{regression_model_forward.1} parent=0 // pred_fallthru
    _
  // Predicated region
  $region14: #{regression_model_forward.1} parent=0 // pred_check
    _
  $region15: #{regression_model_forward.1} parent=0 // pred_check_branch
    %23 = sbr.rel (0) target = $region17
  $region16: #{regression_model_forward.1} parent=0 // pred_region
    _
  $region17: #{regression_model_forward.1} parent=0 // pred_fallthru
    _
  // Predicated region
  $region18: #{regression_model_forward.1} parent=0 // pred_check
    _
  $region19: #{regression_model_forward.1} parent=0 // pred_check_branch
    %25 = sbr.rel (0) target = $region21
  $region20: #{regression_model_forward.1} parent=0 // pred_region
    _
  $region21: #{regression_model_forward.1} parent=0 // pred_fallthru
    _
  // Predicated region
  $region22: #{regression_model_forward.1} parent=0 // pred_check
    _
  $region23: #{regression_model_forward.1} parent=0 // pred_check_branch
    %27 = sbr.rel (0) target = $region25
  $region24: #{regression_model_forward.1} parent=0 // pred_region
    _
  $region25: #{regression_model_forward.1} parent=0 // pred_fallthru
    _
  // Predicated region
  $region26: #{regression_model_forward.1} parent=0 // pred_check
    _
  $region27: #{regression_model_forward.1} parent=0 // pred_check_branch
    %29 = sbr.rel (0) target = $region29
  $region28: #{regression_model_forward.1} parent=0 // pred_region
    _
  $region29: #{regression_model_forward.1} parent=0 // pred_fallthru
    _
  // Predicated region
  $region30: #{regression_model_forward.1} parent=0 // pred_check
    _
  $region31: #{regression_model_forward.1} parent=0 // pred_check_branch
    %31 = sbr.rel (0) target = $region33
  $region32: #{regression_model_forward.1} parent=0 // pred_region
    _
  $region33: #{regression_model_forward.1} parent=0 // pred_fallthru
    _
  // Predicated region
  $region34: #{regression_model_forward.1} parent=0 // pred_check
    _
  $region35: #{regression_model_forward.1} parent=0 // pred_check_branch
    %33 = sbr.rel (0) target = $region37
  $region36: #{regression_model_forward.1} parent=0 // pred_region
    _
  $region37: #{regression_model_forward.1} parent=0 // pred_fallthru
    _
  // Predicated region
  $region38: #{regression_model_forward.1} parent=0 // pred_check
    _
  $region39: #{regression_model_forward.1} parent=0 // pred_check_branch
    %35 = sbr.rel (0) target = $region41
  $region40: #{regression_model_forward.1} parent=0 // pred_region
    _
  $region41: #{regression_model_forward.1} parent=0 // pred_fallthru
    _
  // Predicated region
  $region42: #{regression_model_forward.1} parent=0 // pred_check
    _
  $region43: #{regression_model_forward.1} parent=0 // pred_check_branch
    %37 = sbr.rel (0) target = $region45
  $region44: #{regression_model_forward.1} parent=0 // pred_region
    _
  $region45: #{regression_model_forward.1} parent=0 // pred_fallthru
    _
  %v38 = vld [vmem:[%s0] sm:$0xff]
  %v39 = vld [vmem:[%s1] sm:$0xff]
  %v40 = vld [vmem:[%s1 + $0x8] sm:$0xff]
  %v41 = vld [vmem:[%s1 + $0x10] sm:$0xff]
  %v42 = vld [vmem:[%s1 + $0x18] sm:$0xff]
  %v43 = vld [vmem:[%s1 + $0x20] sm:$0xff]
  %v44 = vld [vmem:[%s1 + $0x28] sm:$0xff]
  %v45 = vld [vmem:[%s1 + $0x30] sm:$0xff]
  %v46 = vld [vmem:[%s1 + $0x38] sm:$0xff]
  %v47 = vld [vmem:[%s1 + $0x40] sm:$0xff]
  %v48 = vld [vmem:[%s1 + $0x48] sm:$0xff]
  %v49 = vld [vmem:[%s1 + $0x50] sm:$0xff]
  %v50 = vld [vmem:[%s1 + $0x58] sm:$0xff]
  %v51 = vld [vmem:[%s1 + $0x60] sm:$0xff]
  %v52 = vld [vmem:[%s1 + $0x68] sm:$0xff]
  %v53 = vld [vmem:[%s1 + $0x70] sm:$0xff]
  %v54 = vld [vmem:[%s1 + $0x78] sm:$0xff]
  %v55 = vld [vmem:[%s1 + $0x80] sm:$0xff]
  %v56 = vld [vmem:[%s1 + $0x88] sm:$0xff]
  %v57 = vld [vmem:[%s1 + $0x90] sm:$0xff]
  %v58 = vld [vmem:[%s1 + $0x98] sm:$0xff]
  %v59 = vld [vmem:[%s1 + $0xa0] sm:$0xff]
  %v60 = vld [vmem:[%s1 + $0xa8] sm:$0xff]
  %v61 = vld [vmem:[%s1 + $0xb0] sm:$0xff]
  %v62 = vld [vmem:[%s1 + $0xb8] sm:$0xff]
  %v63 = vld [vmem:[%s1 + $0xc0] sm:$0xff]
  %v64 = vld [vmem:[%s1 + $0xc8] sm:$0xff]
  %v65 = vld [vmem:[%s1 + $0xd0] sm:$0xff]
  %v66 = vld [vmem:[%s1 + $0xd8] sm:$0xff]
  %v67 = vld [vmem:[%s1 + $0xe0] sm:$0xff]
  %v68 = vld [vmem:[%s1 + $0xe8] sm:$0xff]
  %v69 = vld [vmem:[%s1 + $0xf0] sm:$0xff]
  %v70 = vld [vmem:[%s1 + $0xf8] sm:$0xff]
  %v71 = vld [vmem:[%s1 + $0x100] sm:$0xff]
  %v72 = vld [vmem:[%s1 + $0x108] sm:$0xff]
  %v73 = vld [vmem:[%s1 + $0x110] sm:$0xff]
  %v74 = vld [vmem:[%s1 + $0x118] sm:$0xff]
  %v75 = vld [vmem:[%s1 + $0x120] sm:$0xff]
  %v76 = vld [vmem:[%s1 + $0x128] sm:$0xff]
  %v77 = vld [vmem:[%s1 + $0x130] sm:$0xff]
  %v78 = vld [vmem:[%s1 + $0x138] sm:$0xff]
  %v79 = vld [vmem:[%s1 + $0x140] sm:$0xff]
  %v80 = vld [vmem:[%s1 + $0x148] sm:$0xff]
  %v81 = vld [vmem:[%s1 + $0x150] sm:$0xff]
  %v82 = vld [vmem:[%s1 + $0x158] sm:$0xff]
  %v83 = vld [vmem:[%s1 + $0x160] sm:$0xff]
  %v84 = vld [vmem:[%s1 + $0x168] sm:$0xff]
  %v85 = vld [vmem:[%s1 + $0x170] sm:$0xff]
  %v86 = vld [vmem:[%s1 + $0x178] sm:$0xff]
  %v87 = vld [vmem:[%s1 + $0x180] sm:$0xff]
  %v88 = vld [vmem:[%s1 + $0x188] sm:$0xff]
  %v89 = vld [vmem:[%s1 + $0x190] sm:$0xff]
  %v90 = vld [vmem:[%s1 + $0x198] sm:$0xff]
  %v91 = vld [vmem:[%s1 + $0x1a0] sm:$0xff]
  %v92 = vld [vmem:[%s1 + $0x1a8] sm:$0xff]
  %v93 = vld [vmem:[%s1 + $0x1b0] sm:$0xff]
  %v94 = vld [vmem:[%s1 + $0x1b8] sm:$0xff]
  %v95 = vld [vmem:[%s1 + $0x1c0] sm:$0xff]
  %v96 = vld [vmem:[%s1 + $0x1c8] sm:$0xff]
  %v97 = vld [vmem:[%s1 + $0x1d0] sm:$0xff]
  %v98 = vld [vmem:[%s1 + $0x1d8] sm:$0xff]
  %v99 = vld [vmem:[%s1 + $0x1e0] sm:$0xff]
  %v100 = vld [vmem:[%s1 + $0x1e8] sm:$0xff]
  %v101 = vld [vmem:[%s1 + $0x1f0] sm:$0xff]
  %v102 = vld [vmem:[%s1 + $0x1f8] sm:$0xff]
  %v103 = vld [vmem:[%s1 + $0x200] sm:$0xff]
  %v104 = vld [vmem:[%s1 + $0x208] sm:$0xff]
  %v105 = vld [vmem:[%s1 + $0x210] sm:$0xff]
  %v106 = vld [vmem:[%s1 + $0x218] sm:$0xff]
  %v107 = vld [vmem:[%s1 + $0x220] sm:$0xff]
  %v108 = vld [vmem:[%s1 + $0x228] sm:$0xff]
  %v109 = vld [vmem:[%s1 + $0x230] sm:$0xff]
  %v110 = vld [vmem:[%s1 + $0x238] sm:$0xff]
  %v111 = vld [vmem:[%s1 + $0x240] sm:$0xff]
  %v112 = vld [vmem:[%s1 + $0x248] sm:$0xff]
  %v113 = vld [vmem:[%s1 + $0x250] sm:$0xff]
  %v114 = vld [vmem:[%s1 + $0x258] sm:$0xff]
  %v115 = vld [vmem:[%s1 + $0x260] sm:$0xff]
  %v116 = vld [vmem:[%s1 + $0x268] sm:$0xff]
  %v117 = vld [vmem:[%s1 + $0x270] sm:$0xff]
  %v118 = vld [vmem:[%s1 + $0x278] sm:$0xff]
  %v119 = vld [vmem:[%s1 + $0x280] sm:$0xff]
  %v120 = vld [vmem:[%s1 + $0x288] sm:$0xff]
  %v121 = vld [vmem:[%s1 + $0x290] sm:$0xff]
  %v122 = vld [vmem:[%s1 + $0x298] sm:$0xff]
  %v123 = vld [vmem:[%s1 + $0x2a0] sm:$0xff]
  %v124 = vld [vmem:[%s1 + $0x2a8] sm:$0xff]
  %v125 = vld [vmem:[%s1 + $0x2b0] sm:$0xff]
  %v126 = vld [vmem:[%s1 + $0x2b8] sm:$0xff]
  %v127 = vld [vmem:[%s1 + $0x2c0] sm:$0xff]
  %v128 = vld [vmem:[%s1 + $0x2c8] sm:$0xff]
  %v129 = vld [vmem:[%s1 + $0x2d0] sm:$0xff]
  %v130 = vld [vmem:[%s1 + $0x2d8] sm:$0xff]
  %v131 = vld [vmem:[%s1 + $0x2e0] sm:$0xff]
  %v132 = vld [vmem:[%s1 + $0x2e8] sm:$0xff]
  %v133 = vld [vmem:[%s1 + $0x2f0] sm:$0xff]
  %v134 = vld [vmem:[%s1 + $0x2f8] sm:$0xff]
  %v135 = vld [vmem:[%s1 + $0x300] sm:$0xff]
  %v136 = vld [vmem:[%s1 + $0x308] sm:$0xff]
  %v137 = vld [vmem:[%s1 + $0x310] sm:$0xff]
  %v138 = vld [vmem:[%s1 + $0x318] sm:$0xff]
  %v139 = vld [vmem:[%s1 + $0x320] sm:$0xff]
  %v140 = vld [vmem:[%s1 + $0x328] sm:$0xff]
  %v141 = vld [vmem:[%s1 + $0x330] sm:$0xff]
  %v142 = vld [vmem:[%s1 + $0x338] sm:$0xff]
  %v143 = vld [vmem:[%s1 + $0x340] sm:$0xff]
  %v144 = vld [vmem:[%s1 + $0x348] sm:$0xff]
  %v145 = vld [vmem:[%s1 + $0x350] sm:$0xff]
  %v146 = vld [vmem:[%s1 + $0x358] sm:$0xff]
  %v147 = vld [vmem:[%s1 + $0x360] sm:$0xff]
  %v148 = vld [vmem:[%s1 + $0x368] sm:$0xff]
  %v149 = vld [vmem:[%s1 + $0x370] sm:$0xff]
  %v150 = vld [vmem:[%s1 + $0x378] sm:$0xff]
  %v151 = vld [vmem:[%s1 + $0x380] sm:$0xff]
  %v152 = vld [vmem:[%s1 + $0x388] sm:$0xff]
  %v153 = vld [vmem:[%s1 + $0x390] sm:$0xff]
  %v154 = vld [vmem:[%s1 + $0x398] sm:$0xff]
  %v155 = vld [vmem:[%s1 + $0x3a0] sm:$0xff]
  %v156 = vld [vmem:[%s1 + $0x3a8] sm:$0xff]
  %v157 = vld [vmem:[%s1 + $0x3b0] sm:$0xff]
  %v158 = vld [vmem:[%s1 + $0x3b8] sm:$0xff]
  %v159 = vld [vmem:[%s1 + $0x3c0] sm:$0xff]
  %v160 = vld [vmem:[%s1 + $0x3c8] sm:$0xff]
  %v161 = vld [vmem:[%s1 + $0x3d0] sm:$0xff]
  %v162 = vld [vmem:[%s1 + $0x3d8] sm:$0xff]
  %v163 = vld [vmem:[%s1 + $0x3e0] sm:$0xff]
  %v164 = vld [vmem:[%s1 + $0x3e8] sm:$0xff]
  %v165 = vld [vmem:[%s1 + $0x3f0] sm:$0xff]
  %v166 = vld [vmem:[%s1 + $0x3f8] sm:$0xff]
  %v167 = vld [vmem:[%s1 + $0x400] sm:$0xff]
  %v168 = vld [vmem:[%s1 + $0x408] sm:$0xff]
  %v169 = vld [vmem:[%s1 + $0x410] sm:$0xff]
  %v170 = vld [vmem:[%s1 + $0x418] sm:$0xff]
  %v171 = vld [vmem:[%s1 + $0x420] sm:$0xff]
  %v172 = vld [vmem:[%s1 + $0x428] sm:$0xff]
  %v173 = vld [vmem:[%s1 + $0x430] sm:$0xff]
  %v174 = vld [vmem:[%s1 + $0x438] sm:$0xff]
  %v175 = vld [vmem:[%s1 + $0x440] sm:$0xff]
  %v176 = vld [vmem:[%s1 + $0x448] sm:$0xff]
  %v177 = vld [vmem:[%s1 + $0x450] sm:$0xff]
  %v178 = vld [vmem:[%s1 + $0x458] sm:$0xff]
  %v179 = vld [vmem:[%s1 + $0x460] sm:$0xff]
  %v180 = vld [vmem:[%s1 + $0x468] sm:$0xff]
  %v181 = vld [vmem:[%s1 + $0x470] sm:$0xff]
  %v182 = vld [vmem:[%s1 + $0x478] sm:$0xff]
  %v183 = vld [vmem:[%s1 + $0x480] sm:$0xff]
  %v184 = vld [vmem:[%s1 + $0x488] sm:$0xff]
  %v185 = vld [vmem:[%s1 + $0x490] sm:$0xff]
  %v186 = vld [vmem:[%s1 + $0x498] sm:$0xff]
  %v187 = vld [vmem:[%s1 + $0x4a0] sm:$0xff]
  %v188 = vld [vmem:[%s1 + $0x4a8] sm:$0xff]
  %v189 = vld [vmem:[%s1 + $0x4b0] sm:$0xff]
  %v190 = vld [vmem:[%s1 + $0x4b8] sm:$0xff]
  %v191 = vld [vmem:[%s1 + $0x4c0] sm:$0xff]
  %v192 = vld [vmem:[%s1 + $0x4c8] sm:$0xff]
  %v193 = vld [vmem:[%s1 + $0x4d0] sm:$0xff]
  %v194 = vld [vmem:[%s1 + $0x4d8] sm:$0xff]
  %v195 = vld [vmem:[%s1 + $0x4e0] sm:$0xff]
  %v196 = vld [vmem:[%s1 + $0x4e8] sm:$0xff]
  %v197 = vld [vmem:[%s1 + $0x4f0] sm:$0xff]
  %v198 = vld [vmem:[%s1 + $0x4f8] sm:$0xff]
  %v199 = vld [vmem:[%s1 + $0x500] sm:$0xff]
  %v200 = vld [vmem:[%s1 + $0x508] sm:$0xff]
  %v201 = vld [vmem:[%s1 + $0x510] sm:$0xff]
  %v202 = vld [vmem:[%s1 + $0x518] sm:$0xff]
  %v203 = vld [vmem:[%s1 + $0x520] sm:$0xff]
  %v204 = vld [vmem:[%s1 + $0x528] sm:$0xff]
  %v205 = vld [vmem:[%s1 + $0x530] sm:$0xff]
  %v206 = vld [vmem:[%s1 + $0x538] sm:$0xff]
  %v207 = vld [vmem:[%s1 + $0x540] sm:$0xff]
  %v208 = vld [vmem:[%s1 + $0x548] sm:$0xff]
  %v209 = vld [vmem:[%s1 + $0x550] sm:$0xff]
  %v210 = vld [vmem:[%s1 + $0x558] sm:$0xff]
  %v211 = vld [vmem:[%s1 + $0x560] sm:$0xff]
  %v212 = vld [vmem:[%s1 + $0x568] sm:$0xff]
  %v213 = vld [vmem:[%s1 + $0x570] sm:$0xff]
  %v214 = vld [vmem:[%s1 + $0x578] sm:$0xff]
  %v215 = vld [vmem:[%s1 + $0x580] sm:$0xff]
  %v216 = vld [vmem:[%s1 + $0x588] sm:$0xff]
  %v217 = vld [vmem:[%s1 + $0x590] sm:$0xff]
  %v218 = vld [vmem:[%s1 + $0x598] sm:$0xff]
  %v219 = vld [vmem:[%s1 + $0x5a0] sm:$0xff]
  %v220 = vld [vmem:[%s1 + $0x5a8] sm:$0xff]
  %v221 = vld [vmem:[%s1 + $0x5b0] sm:$0xff]
  %v222 = vld [vmem:[%s1 + $0x5b8] sm:$0xff]
  %v223 = vld [vmem:[%s1 + $0x5c0] sm:$0xff]
  %v224 = vld [vmem:[%s1 + $0x5c8] sm:$0xff]
  %v225 = vld [vmem:[%s1 + $0x5d0] sm:$0xff]
  %v226 = vld [vmem:[%s1 + $0x5d8] sm:$0xff]
  %v227 = vld [vmem:[%s1 + $0x5e0] sm:$0xff]
  %v228 = vld [vmem:[%s1 + $0x5e8] sm:$0xff]
  %v229 = vld [vmem:[%s1 + $0x5f0] sm:$0xff]
  %v230 = vld [vmem:[%s1 + $0x5f8] sm:$0xff]
  %v231 = vld [vmem:[%s1 + $0x600] sm:$0xff]
  %v232 = vld [vmem:[%s1 + $0x608] sm:$0xff]
  %v233 = vld [vmem:[%s1 + $0x610] sm:$0xff]
  %v234 = vld [vmem:[%s1 + $0x618] sm:$0xff]
  %v235 = vld [vmem:[%s1 + $0x620] sm:$0xff]
  %v236 = vld [vmem:[%s1 + $0x628] sm:$0xff]
  %v237 = vld [vmem:[%s1 + $0x630] sm:$0xff]
  %v238 = vld [vmem:[%s1 + $0x638] sm:$0xff]
  %v239 = vld [vmem:[%s1 + $0x640] sm:$0xff]
  %v240 = vld [vmem:[%s1 + $0x648] sm:$0xff]
  %v241 = vld [vmem:[%s1 + $0x650] sm:$0xff]
  %v242 = vld [vmem:[%s1 + $0x658] sm:$0xff]
  %v243 = vld [vmem:[%s1 + $0x660] sm:$0xff]
  %v244 = vld [vmem:[%s1 + $0x668] sm:$0xff]
  %v245 = vld [vmem:[%s1 + $0x670] sm:$0xff]
  %v246 = vld [vmem:[%s1 + $0x678] sm:$0xff]
  %v247 = vld [vmem:[%s1 + $0x680] sm:$0xff]
  %v248 = vld [vmem:[%s1 + $0x688] sm:$0xff]
  %v249 = vld [vmem:[%s1 + $0x690] sm:$0xff]
  %v250 = vld [vmem:[%s1 + $0x698] sm:$0xff]
  %v251 = vld [vmem:[%s1 + $0x6a0] sm:$0xff]
  %v252 = vld [vmem:[%s1 + $0x6a8] sm:$0xff]
  %v253 = vld [vmem:[%s1 + $0x6b0] sm:$0xff]
  %v254 = vld [vmem:[%s1 + $0x6b8] sm:$0xff]
  %v255 = vld [vmem:[%s1 + $0x6c0] sm:$0xff]
  %v256 = vld [vmem:[%s1 + $0x6c8] sm:$0xff]
  %v257 = vld [vmem:[%s1 + $0x6d0] sm:$0xff]
  %v258 = vld [vmem:[%s1 + $0x6d8] sm:$0xff]
  %v259 = vld [vmem:[%s1 + $0x6e0] sm:$0xff]
  %v260 = vld [vmem:[%s1 + $0x6e8] sm:$0xff]
  %v261 = vld [vmem:[%s1 + $0x6f0] sm:$0xff]
  %v262 = vld [vmem:[%s1 + $0x6f8] sm:$0xff]
  %v263 = vld [vmem:[%s1 + $0x700] sm:$0xff]
  %v264 = vld [vmem:[%s1 + $0x708] sm:$0xff]
  %v265 = vld [vmem:[%s1 + $0x710] sm:$0xff]
  %v266 = vld [vmem:[%s1 + $0x718] sm:$0xff]
  %v267 = vld [vmem:[%s1 + $0x720] sm:$0xff]
  %v268 = vld [vmem:[%s1 + $0x728] sm:$0xff]
  %v269 = vld [vmem:[%s1 + $0x730] sm:$0xff]
  %v270 = vld [vmem:[%s1 + $0x738] sm:$0xff]
  %v271 = vld [vmem:[%s1 + $0x740] sm:$0xff]
  %v272 = vld [vmem:[%s1 + $0x748] sm:$0xff]
  %v273 = vld [vmem:[%s1 + $0x750] sm:$0xff]
  %v274 = vld [vmem:[%s1 + $0x758] sm:$0xff]
  %v275 = vld [vmem:[%s1 + $0x760] sm:$0xff]
  %v276 = vld [vmem:[%s1 + $0x768] sm:$0xff]
  %v277 = vld [vmem:[%s1 + $0x770] sm:$0xff]
  %v278 = vld [vmem:[%s1 + $0x778] sm:$0xff]
  %v279 = vld [vmem:[%s1 + $0x780] sm:$0xff]
  %v280 = vld [vmem:[%s1 + $0x788] sm:$0xff]
  %v281 = vld [vmem:[%s1 + $0x790] sm:$0xff]
  %v282 = vld [vmem:[%s1 + $0x798] sm:$0xff]
  %v283 = vld [vmem:[%s1 + $0x7a0] sm:$0xff]
  %v284 = vld [vmem:[%s1 + $0x7a8] sm:$0xff]
  %v285 = vld [vmem:[%s1 + $0x7b0] sm:$0xff]
  %v286 = vld [vmem:[%s1 + $0x7b8] sm:$0xff]
  %v287 = vld [vmem:[%s1 + $0x7c0] sm:$0xff]
  %v288 = vld [vmem:[%s1 + $0x7c8] sm:$0xff]
  %v289 = vld [vmem:[%s1 + $0x7d0] sm:$0xff]
  %v290 = vld [vmem:[%s1 + $0x7d8] sm:$0xff]
  %v291 = vld [vmem:[%s1 + $0x7e0] sm:$0xff]
  %v292 = vld [vmem:[%s1 + $0x7e8] sm:$0xff]
  %v293 = vld [vmem:[%s1 + $0x7f0] sm:$0xff]
  %v294 = vld [vmem:[%s1 + $0x7f8] sm:$0xff]
  %295 = vmatprep.subr.mxu0 %v280
  %296 = vmatpush1.msra.mxu0 %v279
  %297 = vmatprep.subr.mxu0 %v264
  %298 = vmatpush1.msra.mxu0 %v263
  %299 = vmatprep.subr.mxu0 %v248
  %300 = vmatpush1.msra.mxu0 %v247
  %301 = vmatprep.subr.mxu0 %v232
  %302 = vmatpush1.msra.mxu0 %v231
  %303 = vmatprep.subr.mxu0 %v216
  %304 = vmatpush1.msra.mxu0 %v215
  %305 = vmatprep.subr.mxu0 %v200
  %306 = vmatpush1.msra.mxu0 %v199
  %307 = vmatprep.subr.mxu0 %v184
  %308 = vmatpush1.msra.mxu0 %v183
  %309 = vmatprep.subr.mxu0 %v168
  %310 = vmatpush1.msra.mxu0 %v167
  %311 = vmatprep.subr.mxu0 %v152
  %312 = vmatpush1.msra.mxu0 %v151
  %313 = vmatprep.subr.mxu0 %v136
  %314 = vmatpush1.msra.mxu0 %v135
  %315 = vmatprep.subr.mxu0 %v120
  %316 = vmatpush1.msra.mxu0 %v119
  %317 = vmatprep.subr.mxu0 %v104
  %318 = vmatpush1.msra.mxu0 %v103
  %319 = vmatprep.subr.mxu0 %v88
  %320 = vmatpush1.msra.mxu0 %v87
  %321 = vmatprep.subr.mxu0 %v72
  %322 = vmatpush1.msra.mxu0 %v71
  %323 = vmatprep.subr.mxu0 %v56
  %324 = vmatpush1.msra.mxu0 %v55
  %325 = vmatprep.subr.mxu0 %v40
  %326 = vmatpush1.msra.mxu0 %v39
  %327 = vmatprep.subr.mxu0 0.0
  %328 = vmatpush2.msra.mxu0 0.0
  %329 = vmatprep.subr.mxu0 0.0
  %330 = vmatpush2.msra.mxu0 0.0
  %331 = vmatprep.subr.mxu0 0.0
  %332 = vmatpush2.msra.mxu0 0.0
  %333 = vmatprep.subr.mxu0 0.0
  %334 = vmatpush2.msra.mxu0 0.0
  %335 = vmatprep.subr.mxu0 0.0
  %336 = vmatpush2.msra.mxu0 0.0
  %337 = vmatprep.subr.mxu0 0.0
  %338 = vmatpush2.msra.mxu0 0.0
  %339 = vmatprep.subr.mxu0 0.0
  %340 = vmatpush2.msra.mxu0 0.0
  %341 = vmatprep.subr.mxu0 0.0
  %342 = vmatpush2.msra.mxu0 0.0
  %343 = vmatprep.subr.mxu0 0.0
  %344 = vmatpush2.msra.mxu0 0.0
  %345 = vmatprep.subr.mxu0 0.0
  %346 = vmatpush2.msra.mxu0 0.0
  %347 = vmatprep.subr.mxu0 0.0
  %348 = vmatpush2.msra.mxu0 0.0
  %349 = vmatprep.subr.mxu0 0.0
  %350 = vmatpush2.msra.mxu0 0.0
  %351 = vmatprep.subr.mxu0 0.0
  %352 = vmatpush2.msra.mxu0 0.0
  %353 = vmatprep.subr.mxu0 0.0
  %354 = vmatpush2.msra.mxu0 0.0
  %355 = vmatprep.subr.mxu0 0.0
  %356 = vmatpush2.msra.mxu0 0.0
  %357 = vmatprep.subr.mxu0 0.0
  %358 = vmatpush2.msra.mxu0 0.0
  %359 = vmatprep.mubr.f32.mxu0 0.0
  %360 = vmatmul.mubr.f32.gmra.mxu0 %v38
  %v361 = vpop.f32.mrf.mxu0
  %v362 = vadd.f32 0.0, %v361
  %v363 = vpop.f32.mrf.mxu0
  %v364 = vadd.f32 0.0, %v363
  %365 = vdwg.mxu0
  %366 = vmatprep.subr.mxu0 %v282
  %367 = vmatpush1.msra.mxu0 %v281
  %368 = vmatprep.subr.mxu0 %v266
  %369 = vmatpush1.msra.mxu0 %v265
  %370 = vmatprep.subr.mxu0 %v250
  %371 = vmatpush1.msra.mxu0 %v249
  %372 = vmatprep.subr.mxu0 %v234
  %373 = vmatpush1.msra.mxu0 %v233
  %374 = vmatprep.subr.mxu0 %v218
  %375 = vmatpush1.msra.mxu0 %v217
  %376 = vmatprep.subr.mxu0 %v202
  %377 = vmatpush1.msra.mxu0 %v201
  %378 = vmatprep.subr.mxu0 %v186
  %379 = vmatpush1.msra.mxu0 %v185
  %380 = vmatprep.subr.mxu0 %v170
  %381 = vmatpush1.msra.mxu0 %v169
  %382 = vmatprep.subr.mxu0 %v154
  %383 = vmatpush1.msra.mxu0 %v153
  %384 = vmatprep.subr.mxu0 %v138
  %385 = vmatpush1.msra.mxu0 %v137
  %386 = vmatprep.subr.mxu0 %v122
  %387 = vmatpush1.msra.mxu0 %v121
  %388 = vmatprep.subr.mxu0 %v106
  %389 = vmatpush1.msra.mxu0 %v105
  %390 = vmatprep.subr.mxu0 %v90
  %391 = vmatpush1.msra.mxu0 %v89
  %392 = vmatprep.subr.mxu0 %v74
  %393 = vmatpush1.msra.mxu0 %v73
  %394 = vmatprep.subr.mxu0 %v58
  %395 = vmatpush1.msra.mxu0 %v57
  %396 = vmatprep.subr.mxu0 %v42
  %397 = vmatpush1.msra.mxu0 %v41
  %398 = vmatprep.subr.mxu0 0.0
  %399 = vmatpush2.msra.mxu0 0.0
  %400 = vmatprep.subr.mxu0 0.0
  %401 = vmatpush2.msra.mxu0 0.0
  %402 = vmatprep.subr.mxu0 0.0
  %403 = vmatpush2.msra.mxu0 0.0
  %404 = vmatprep.subr.mxu0 0.0
  %405 = vmatpush2.msra.mxu0 0.0
  %406 = vmatprep.subr.mxu0 0.0
  %407 = vmatpush2.msra.mxu0 0.0
  %408 = vmatprep.subr.mxu0 0.0
  %409 = vmatpush2.msra.mxu0 0.0
  %410 = vmatprep.subr.mxu0 0.0
  %411 = vmatpush2.msra.mxu0 0.0
  %412 = vmatprep.subr.mxu0 0.0
  %413 = vmatpush2.msra.mxu0 0.0
  %414 = vmatprep.subr.mxu0 0.0
  %415 = vmatpush2.msra.mxu0 0.0
  %416 = vmatprep.subr.mxu0 0.0
  %417 = vmatpush2.msra.mxu0 0.0
  %418 = vmatprep.subr.mxu0 0.0
  %419 = vmatpush2.msra.mxu0 0.0
  %420 = vmatprep.subr.mxu0 0.0
  %421 = vmatpush2.msra.mxu0 0.0
  %422 = vmatprep.subr.mxu0 0.0
  %423 = vmatpush2.msra.mxu0 0.0
  %424 = vmatprep.subr.mxu0 0.0
  %425 = vmatpush2.msra.mxu0 0.0
  %426 = vmatprep.subr.mxu0 0.0
  %427 = vmatpush2.msra.mxu0 0.0
  %428 = vmatprep.subr.mxu0 0.0
  %429 = vmatpush2.msra.mxu0 0.0
  %430 = vmatprep.mubr.f32.mxu0 0.0
  %431 = vmatmul.mubr.f32.gmra.mxu0 %v38
  %v432 = vpop.f32.mrf.mxu0
  %v433 = vadd.f32 0.0, %v432
  %v434 = vpop.f32.mrf.mxu0
  %v435 = vadd.f32 0.0, %v434
  %436 = vdwg.mxu0
  %437 = vmatprep.subr.mxu0 %v284
  %438 = vmatpush1.msra.mxu0 %v283
  %439 = vmatprep.subr.mxu0 %v268
  %440 = vmatpush1.msra.mxu0 %v267
  %441 = vmatprep.subr.mxu0 %v252
  %442 = vmatpush1.msra.mxu0 %v251
  %443 = vmatprep.subr.mxu0 %v236
  %444 = vmatpush1.msra.mxu0 %v235
  %445 = vmatprep.subr.mxu0 %v220
  %446 = vmatpush1.msra.mxu0 %v219
  %447 = vmatprep.subr.mxu0 %v204
  %448 = vmatpush1.msra.mxu0 %v203
  %449 = vmatprep.subr.mxu0 %v188
  %450 = vmatpush1.msra.mxu0 %v187
  %451 = vmatprep.subr.mxu0 %v172
  %452 = vmatpush1.msra.mxu0 %v171
  %453 = vmatprep.subr.mxu0 %v156
  %454 = vmatpush1.msra.mxu0 %v155
  %455 = vmatprep.subr.mxu0 %v140
  %456 = vmatpush1.msra.mxu0 %v139
  %457 = vmatprep.subr.mxu0 %v124
  %458 = vmatpush1.msra.mxu0 %v123
  %459 = vmatprep.subr.mxu0 %v108
  %460 = vmatpush1.msra.mxu0 %v107
  %461 = vmatprep.subr.mxu0 %v92
  %462 = vmatpush1.msra.mxu0 %v91
  %463 = vmatprep.subr.mxu0 %v76
  %464 = vmatpush1.msra.mxu0 %v75
  %465 = vmatprep.subr.mxu0 %v60
  %466 = vmatpush1.msra.mxu0 %v59
  %467 = vmatprep.subr.mxu0 %v44
  %468 = vmatpush1.msra.mxu0 %v43
  %469 = vmatprep.subr.mxu0 0.0
  %470 = vmatpush2.msra.mxu0 0.0
  %471 = vmatprep.subr.mxu0 0.0
  %472 = vmatpush2.msra.mxu0 0.0
  %473 = vmatprep.subr.mxu0 0.0
  %474 = vmatpush2.msra.mxu0 0.0
  %475 = vmatprep.subr.mxu0 0.0
  %476 = vmatpush2.msra.mxu0 0.0
  %477 = vmatprep.subr.mxu0 0.0
  %478 = vmatpush2.msra.mxu0 0.0
  %479 = vmatprep.subr.mxu0 0.0
  %480 = vmatpush2.msra.mxu0 0.0
  %481 = vmatprep.subr.mxu0 0.0
  %482 = vmatpush2.msra.mxu0 0.0
  %483 = vmatprep.subr.mxu0 0.0
  %484 = vmatpush2.msra.mxu0 0.0
  %485 = vmatprep.subr.mxu0 0.0
  %486 = vmatpush2.msra.mxu0 0.0
  %487 = vmatprep.subr.mxu0 0.0
  %488 = vmatpush2.msra.mxu0 0.0
  %489 = vmatprep.subr.mxu0 0.0
  %490 = vmatpush2.msra.mxu0 0.0
  %491 = vmatprep.subr.mxu0 0.0
  %492 = vmatpush2.msra.mxu0 0.0
  %493 = vmatprep.subr.mxu0 0.0
  %494 = vmatpush2.msra.mxu0 0.0
  %495 = vmatprep.subr.mxu0 0.0
  %496 = vmatpush2.msra.mxu0 0.0
  %497 = vmatprep.subr.mxu0 0.0
  %498 = vmatpush2.msra.mxu0 0.0
  %499 = vmatprep.subr.mxu0 0.0
  %500 = vmatpush2.msra.mxu0 0.0
  %501 = vmatprep.mubr.f32.mxu0 0.0
  %502 = vmatmul.mubr.f32.gmra.mxu0 %v38
  %v503 = vpop.f32.mrf.mxu0
  %v504 = vadd.f32 0.0, %v503
  %v505 = vpop.f32.mrf.mxu0
  %v506 = vadd.f32 0.0, %v505
  %507 = vdwg.mxu0
  %508 = vmatprep.subr.mxu0 %v286
  %509 = vmatpush1.msra.mxu0 %v285
  %510 = vmatprep.subr.mxu0 %v270
  %511 = vmatpush1.msra.mxu0 %v269
  %512 = vmatprep.subr.mxu0 %v254
  %513 = vmatpush1.msra.mxu0 %v253
  %514 = vmatprep.subr.mxu0 %v238
  %515 = vmatpush1.msra.mxu0 %v237
  %516 = vmatprep.subr.mxu0 %v222
  %517 = vmatpush1.msra.mxu0 %v221
  %518 = vmatprep.subr.mxu0 %v206
  %519 = vmatpush1.msra.mxu0 %v205
  %520 = vmatprep.subr.mxu0 %v190
  %521 = vmatpush1.msra.mxu0 %v189
  %522 = vmatprep.subr.mxu0 %v174
  %523 = vmatpush1.msra.mxu0 %v173
  %524 = vmatprep.subr.mxu0 %v158
  %525 = vmatpush1.msra.mxu0 %v157
  %526 = vmatprep.subr.mxu0 %v142
  %527 = vmatpush1.msra.mxu0 %v141
  %528 = vmatprep.subr.mxu0 %v126
  %529 = vmatpush1.msra.mxu0 %v125
  %530 = vmatprep.subr.mxu0 %v110
  %531 = vmatpush1.msra.mxu0 %v109
  %532 = vmatprep.subr.mxu0 %v94
  %533 = vmatpush1.msra.mxu0 %v93
  %534 = vmatprep.subr.mxu0 %v78
  %535 = vmatpush1.msra.mxu0 %v77
  %536 = vmatprep.subr.mxu0 %v62
  %537 = vmatpush1.msra.mxu0 %v61
  %538 = vmatprep.subr.mxu0 %v46
  %539 = vmatpush1.msra.mxu0 %v45
  %540 = vmatprep.subr.mxu0 0.0
  %541 = vmatpush2.msra.mxu0 0.0
  %542 = vmatprep.subr.mxu0 0.0
  %543 = vmatpush2.msra.mxu0 0.0
  %544 = vmatprep.subr.mxu0 0.0
  %545 = vmatpush2.msra.mxu0 0.0
  %546 = vmatprep.subr.mxu0 0.0
  %547 = vmatpush2.msra.mxu0 0.0
  %548 = vmatprep.subr.mxu0 0.0
  %549 = vmatpush2.msra.mxu0 0.0
  %550 = vmatprep.subr.mxu0 0.0
  %551 = vmatpush2.msra.mxu0 0.0
  %552 = vmatprep.subr.mxu0 0.0
  %553 = vmatpush2.msra.mxu0 0.0
  %554 = vmatprep.subr.mxu0 0.0
  %555 = vmatpush2.msra.mxu0 0.0
  %556 = vmatprep.subr.mxu0 0.0
  %557 = vmatpush2.msra.mxu0 0.0
  %558 = vmatprep.subr.mxu0 0.0
  %559 = vmatpush2.msra.mxu0 0.0
  %560 = vmatprep.subr.mxu0 0.0
  %561 = vmatpush2.msra.mxu0 0.0
  %562 = vmatprep.subr.mxu0 0.0
  %563 = vmatpush2.msra.mxu0 0.0
  %564 = vmatprep.subr.mxu0 0.0
  %565 = vmatpush2.msra.mxu0 0.0
  %566 = vmatprep.subr.mxu0 0.0
  %567 = vmatpush2.msra.mxu0 0.0
  %568 = vmatprep.subr.mxu0 0.0
  %569 = vmatpush2.msra.mxu0 0.0
  %570 = vmatprep.subr.mxu0 0.0
  %571 = vmatpush2.msra.mxu0 0.0
  %572 = vmatprep.mubr.f32.mxu0 0.0
  %573 = vmatmul.mubr.f32.gmra.mxu0 %v38
  %v574 = vpop.f32.mrf.mxu0
  %v575 = vadd.f32 0.0, %v574
  %v576 = vpop.f32.mrf.mxu0
  %v577 = vadd.f32 0.0, %v576
  %578 = vdwg.mxu0
  %579 = vmatprep.subr.mxu0 %v288
  %580 = vmatpush1.msra.mxu0 %v287
  %581 = vmatprep.subr.mxu0 %v272
  %582 = vmatpush1.msra.mxu0 %v271
  %583 = vmatprep.subr.mxu0 %v256
  %584 = vmatpush1.msra.mxu0 %v255
  %585 = vmatprep.subr.mxu0 %v240
  %586 = vmatpush1.msra.mxu0 %v239
  %587 = vmatprep.subr.mxu0 %v224
  %588 = vmatpush1.msra.mxu0 %v223
  %589 = vmatprep.subr.mxu0 %v208
  %590 = vmatpush1.msra.mxu0 %v207
  %591 = vmatprep.subr.mxu0 %v192
  %592 = vmatpush1.msra.mxu0 %v191
  %593 = vmatprep.subr.mxu0 %v176
  %594 = vmatpush1.msra.mxu0 %v175
  %595 = vmatprep.subr.mxu0 %v160
  %596 = vmatpush1.msra.mxu0 %v159
  %597 = vmatprep.subr.mxu0 %v144
  %598 = vmatpush1.msra.mxu0 %v143
  %599 = vmatprep.subr.mxu0 %v128
  %600 = vmatpush1.msra.mxu0 %v127
  %601 = vmatprep.subr.mxu0 %v112
  %602 = vmatpush1.msra.mxu0 %v111
  %603 = vmatprep.subr.mxu0 %v96
  %604 = vmatpush1.msra.mxu0 %v95
  %605 = vmatprep.subr.mxu0 %v80
  %606 = vmatpush1.msra.mxu0 %v79
  %607 = vmatprep.subr.mxu0 %v64
  %608 = vmatpush1.msra.mxu0 %v63
  %609 = vmatprep.subr.mxu0 %v48
  %610 = vmatpush1.msra.mxu0 %v47
  %611 = vmatprep.subr.mxu0 0.0
  %612 = vmatpush2.msra.mxu0 0.0
  %613 = vmatprep.subr.mxu0 0.0
  %614 = vmatpush2.msra.mxu0 0.0
  %615 = vmatprep.subr.mxu0 0.0
  %616 = vmatpush2.msra.mxu0 0.0
  %617 = vmatprep.subr.mxu0 0.0
  %618 = vmatpush2.msra.mxu0 0.0
  %619 = vmatprep.subr.mxu0 0.0
  %620 = vmatpush2.msra.mxu0 0.0
  %621 = vmatprep.subr.mxu0 0.0
  %622 = vmatpush2.msra.mxu0 0.0
  %623 = vmatprep.subr.mxu0 0.0
  %624 = vmatpush2.msra.mxu0 0.0
  %625 = vmatprep.subr.mxu0 0.0
  %626 = vmatpush2.msra.mxu0 0.0
  %627 = vmatprep.subr.mxu0 0.0
  %628 = vmatpush2.msra.mxu0 0.0
  %629 = vmatprep.subr.mxu0 0.0
  %630 = vmatpush2.msra.mxu0 0.0
  %631 = vmatprep.subr.mxu0 0.0
  %632 = vmatpush2.msra.mxu0 0.0
  %633 = vmatprep.subr.mxu0 0.0
  %634 = vmatpush2.msra.mxu0 0.0
  %635 = vmatprep.subr.mxu0 0.0
  %636 = vmatpush2.msra.mxu0 0.0
  %637 = vmatprep.subr.mxu0 0.0
  %638 = vmatpush2.msra.mxu0 0.0
  %639 = vmatprep.subr.mxu0 0.0
  %640 = vmatpush2.msra.mxu0 0.0
  %641 = vmatprep.subr.mxu0 0.0
  %642 = vmatpush2.msra.mxu0 0.0
  %643 = vmatprep.mubr.f32.mxu0 0.0
  %644 = vmatmul.mubr.f32.gmra.mxu0 %v38
  %v645 = vpop.f32.mrf.mxu0
  %v646 = vadd.f32 0.0, %v645
  %v647 = vpop.f32.mrf.mxu0
  %v648 = vadd.f32 0.0, %v647
  %649 = vdwg.mxu0
  %650 = vmatprep.subr.mxu0 %v290
  %651 = vmatpush1.msra.mxu0 %v289
  %652 = vmatprep.subr.mxu0 %v274
  %653 = vmatpush1.msra.mxu0 %v273
  %654 = vmatprep.subr.mxu0 %v258
  %655 = vmatpush1.msra.mxu0 %v257
  %656 = vmatprep.subr.mxu0 %v242
  %657 = vmatpush1.msra.mxu0 %v241
  %658 = vmatprep.subr.mxu0 %v226
  %659 = vmatpush1.msra.mxu0 %v225
  %660 = vmatprep.subr.mxu0 %v210
  %661 = vmatpush1.msra.mxu0 %v209
  %662 = vmatprep.subr.mxu0 %v194
  %663 = vmatpush1.msra.mxu0 %v193
  %664 = vmatprep.subr.mxu0 %v178
  %665 = vmatpush1.msra.mxu0 %v177
  %666 = vmatprep.subr.mxu0 %v162
  %667 = vmatpush1.msra.mxu0 %v161
  %668 = vmatprep.subr.mxu0 %v146
  %669 = vmatpush1.msra.mxu0 %v145
  %670 = vmatprep.subr.mxu0 %v130
  %671 = vmatpush1.msra.mxu0 %v129
  %672 = vmatprep.subr.mxu0 %v114
  %673 = vmatpush1.msra.mxu0 %v113
  %674 = vmatprep.subr.mxu0 %v98
  %675 = vmatpush1.msra.mxu0 %v97
  %676 = vmatprep.subr.mxu0 %v82
  %677 = vmatpush1.msra.mxu0 %v81
  %678 = vmatprep.subr.mxu0 %v66
  %679 = vmatpush1.msra.mxu0 %v65
  %680 = vmatprep.subr.mxu0 %v50
  %681 = vmatpush1.msra.mxu0 %v49
  %682 = vmatprep.subr.mxu0 0.0
  %683 = vmatpush2.msra.mxu0 0.0
  %684 = vmatprep.subr.mxu0 0.0
  %685 = vmatpush2.msra.mxu0 0.0
  %686 = vmatprep.subr.mxu0 0.0
  %687 = vmatpush2.msra.mxu0 0.0
  %688 = vmatprep.subr.mxu0 0.0
  %689 = vmatpush2.msra.mxu0 0.0
  %690 = vmatprep.subr.mxu0 0.0
  %691 = vmatpush2.msra.mxu0 0.0
  %692 = vmatprep.subr.mxu0 0.0
  %693 = vmatpush2.msra.mxu0 0.0
  %694 = vmatprep.subr.mxu0 0.0
  %695 = vmatpush2.msra.mxu0 0.0
  %696 = vmatprep.subr.mxu0 0.0
  %697 = vmatpush2.msra.mxu0 0.0
  %698 = vmatprep.subr.mxu0 0.0
  %699 = vmatpush2.msra.mxu0 0.0
  %700 = vmatprep.subr.mxu0 0.0
  %701 = vmatpush2.msra.mxu0 0.0
  %702 = vmatprep.subr.mxu0 0.0
  %703 = vmatpush2.msra.mxu0 0.0
  %704 = vmatprep.subr.mxu0 0.0
  %705 = vmatpush2.msra.mxu0 0.0
  %706 = vmatprep.subr.mxu0 0.0
  %707 = vmatpush2.msra.mxu0 0.0
  %708 = vmatprep.subr.mxu0 0.0
  %709 = vmatpush2.msra.mxu0 0.0
  %710 = vmatprep.subr.mxu0 0.0
  %711 = vmatpush2.msra.mxu0 0.0
  %712 = vmatprep.subr.mxu0 0.0
  %713 = vmatpush2.msra.mxu0 0.0
  %714 = vmatprep.mubr.f32.mxu0 0.0
  %715 = vmatmul.mubr.f32.gmra.mxu0 %v38
  %v716 = vpop.f32.mrf.mxu0
  %v717 = vadd.f32 0.0, %v716
  %v718 = vpop.f32.mrf.mxu0
  %v719 = vadd.f32 0.0, %v718
  %720 = vdwg.mxu0
  %721 = vmatprep.subr.mxu0 %v292
  %722 = vmatpush1.msra.mxu0 %v291
  %723 = vmatprep.subr.mxu0 %v276
  %724 = vmatpush1.msra.mxu0 %v275
  %725 = vmatprep.subr.mxu0 %v260
  %726 = vmatpush1.msra.mxu0 %v259
  %727 = vmatprep.subr.mxu0 %v244
  %728 = vmatpush1.msra.mxu0 %v243
  %729 = vmatprep.subr.mxu0 %v228
  %730 = vmatpush1.msra.mxu0 %v227
  %731 = vmatprep.subr.mxu0 %v212
  %732 = vmatpush1.msra.mxu0 %v211
  %733 = vmatprep.subr.mxu0 %v196
  %734 = vmatpush1.msra.mxu0 %v195
  %735 = vmatprep.subr.mxu0 %v180
  %736 = vmatpush1.msra.mxu0 %v179
  %737 = vmatprep.subr.mxu0 %v164
  %738 = vmatpush1.msra.mxu0 %v163
  %739 = vmatprep.subr.mxu0 %v148
  %740 = vmatpush1.msra.mxu0 %v147
  %741 = vmatprep.subr.mxu0 %v132
  %742 = vmatpush1.msra.mxu0 %v131
  %743 = vmatprep.subr.mxu0 %v116
  %744 = vmatpush1.msra.mxu0 %v115
  %745 = vmatprep.subr.mxu0 %v100
  %746 = vmatpush1.msra.mxu0 %v99
  %747 = vmatprep.subr.mxu0 %v84
  %748 = vmatpush1.msra.mxu0 %v83
  %749 = vmatprep.subr.mxu0 %v68
  %750 = vmatpush1.msra.mxu0 %v67
  %751 = vmatprep.subr.mxu0 %v52
  %752 = vmatpush1.msra.mxu0 %v51
  %753 = vmatprep.subr.mxu0 0.0
  %754 = vmatpush2.msra.mxu0 0.0
  %755 = vmatprep.subr.mxu0 0.0
  %756 = vmatpush2.msra.mxu0 0.0
  %757 = vmatprep.subr.mxu0 0.0
  %758 = vmatpush2.msra.mxu0 0.0
  %759 = vmatprep.subr.mxu0 0.0
  %760 = vmatpush2.msra.mxu0 0.0
  %761 = vmatprep.subr.mxu0 0.0
  %762 = vmatpush2.msra.mxu0 0.0
  %763 = vmatprep.subr.mxu0 0.0
  %764 = vmatpush2.msra.mxu0 0.0
  %765 = vmatprep.subr.mxu0 0.0
  %766 = vmatpush2.msra.mxu0 0.0
  %767 = vmatprep.subr.mxu0 0.0
  %768 = vmatpush2.msra.mxu0 0.0
  %769 = vmatprep.subr.mxu0 0.0
  %770 = vmatpush2.msra.mxu0 0.0
  %771 = vmatprep.subr.mxu0 0.0
  %772 = vmatpush2.msra.mxu0 0.0
  %773 = vmatprep.subr.mxu0 0.0
  %774 = vmatpush2.msra.mxu0 0.0
  %775 = vmatprep.subr.mxu0 0.0
  %776 = vmatpush2.msra.mxu0 0.0
  %777 = vmatprep.subr.mxu0 0.0
  %778 = vmatpush2.msra.mxu0 0.0
  %779 = vmatprep.subr.mxu0 0.0
  %780 = vmatpush2.msra.mxu0 0.0
  %781 = vmatprep.subr.mxu0 0.0
  %782 = vmatpush2.msra.mxu0 0.0
  %783 = vmatprep.subr.mxu0 0.0
  %784 = vmatpush2.msra.mxu0 0.0
  %785 = vmatprep.mubr.f32.mxu0 0.0
  %786 = vmatmul.mubr.f32.gmra.mxu0 %v38
  %v787 = vpop.f32.mrf.mxu0
  %v788 = vadd.f32 0.0, %v787
  %v789 = vpop.f32.mrf.mxu0
  %v790 = vadd.f32 0.0, %v789
  %791 = vdwg.mxu0
  %792 = vmatprep.subr.mxu0 %v294
  %793 = vmatpush1.msra.mxu0 %v293
  %794 = vmatprep.subr.mxu0 %v278
  %795 = vmatpush1.msra.mxu0 %v277
  %796 = vmatprep.subr.mxu0 %v262
  %797 = vmatpush1.msra.mxu0 %v261
  %798 = vmatprep.subr.mxu0 %v246
  %799 = vmatpush1.msra.mxu0 %v245
  %800 = vmatprep.subr.mxu0 %v230
  %801 = vmatpush1.msra.mxu0 %v229
  %802 = vmatprep.subr.mxu0 %v214
  %803 = vmatpush1.msra.mxu0 %v213
  %804 = vmatprep.subr.mxu0 %v198
  %805 = vmatpush1.msra.mxu0 %v197
  %806 = vmatprep.subr.mxu0 %v182
  %807 = vmatpush1.msra.mxu0 %v181
  %808 = vmatprep.subr.mxu0 %v166
  %809 = vmatpush1.msra.mxu0 %v165
  %810 = vmatprep.subr.mxu0 %v150
  %811 = vmatpush1.msra.mxu0 %v149
  %812 = vmatprep.subr.mxu0 %v134
  %813 = vmatpush1.msra.mxu0 %v133
  %814 = vmatprep.subr.mxu0 %v118
  %815 = vmatpush1.msra.mxu0 %v117
  %816 = vmatprep.subr.mxu0 %v102
  %817 = vmatpush1.msra.mxu0 %v101
  %818 = vmatprep.subr.mxu0 %v86
  %819 = vmatpush1.msra.mxu0 %v85
  %820 = vmatprep.subr.mxu0 %v70
  %821 = vmatpush1.msra.mxu0 %v69
  %822 = vmatprep.subr.mxu0 %v54
  %823 = vmatpush1.msra.mxu0 %v53
  %824 = vmatprep.subr.mxu0 0.0
  %825 = vmatpush2.msra.mxu0 0.0
  %826 = vmatprep.subr.mxu0 0.0
  %827 = vmatpush2.msra.mxu0 0.0
  %828 = vmatprep.subr.mxu0 0.0
  %829 = vmatpush2.msra.mxu0 0.0
  %830 = vmatprep.subr.mxu0 0.0
  %831 = vmatpush2.msra.mxu0 0.0
  %832 = vmatprep.subr.mxu0 0.0
  %833 = vmatpush2.msra.mxu0 0.0
  %834 = vmatprep.subr.mxu0 0.0
  %835 = vmatpush2.msra.mxu0 0.0
  %836 = vmatprep.subr.mxu0 0.0
  %837 = vmatpush2.msra.mxu0 0.0
  %838 = vmatprep.subr.mxu0 0.0
  %839 = vmatpush2.msra.mxu0 0.0
  %840 = vmatprep.subr.mxu0 0.0
  %841 = vmatpush2.msra.mxu0 0.0
  %842 = vmatprep.subr.mxu0 0.0
  %843 = vmatpush2.msra.mxu0 0.0
  %844 = vmatprep.subr.mxu0 0.0
  %845 = vmatpush2.msra.mxu0 0.0
  %846 = vmatprep.subr.mxu0 0.0
  %847 = vmatpush2.msra.mxu0 0.0
  %848 = vmatprep.subr.mxu0 0.0
  %849 = vmatpush2.msra.mxu0 0.0
  %850 = vmatprep.subr.mxu0 0.0
  %851 = vmatpush2.msra.mxu0 0.0
  %852 = vmatprep.subr.mxu0 0.0
  %853 = vmatpush2.msra.mxu0 0.0
  %854 = vmatprep.subr.mxu0 0.0
  %855 = vmatpush2.msra.mxu0 0.0
  %856 = vmatprep.mubr.f32.mxu0 0.0
  %857 = vmatmul.mubr.f32.gmra.mxu0 %v38
  %v858 = vpop.f32.mrf.mxu0
  %v859 = vadd.f32 0.0, %v858
  %v860 = vpop.f32.mrf.mxu0
  %v861 = vadd.f32 0.0, %v860
  %862 = vdwg.mxu0
  %v863 = vmax.f32 %v362, %v504
  %v864 = vmax.f32 %v364, %v506
  %v865 = vmax.f32 %v433, %v575
  %v866 = vmax.f32 %v435, %v577
  %v867 = vmax.f32 %v646, %v788
  %v868 = vmax.f32 %v648, %v790
  %v869 = vmax.f32 %v717, %v859
  %v870 = vmax.f32 %v719, %v861
  %v871 = vmax.f32 %v863, %v867
  %v872 = vmax.f32 %v864, %v868
  %v873 = vmax.f32 %v865, %v869
  %v874 = vmax.f32 %v866, %v870
  %v875 = vld [vmem:[%s2] sm:$0xf]
  %v877 = vlaneseq
  %v878 = vshrl.u32 %v877, 7
  %v879 = vsub.s32 0, %v878
  %v880 = vrot.slane %v875, %v879
  %v881 = vlaneseq
  %v882 = vshrl.u32 %v881, 7
  %v883 = vsub.s32 1, %v882
  %v884 = vrot.slane %v875, %v883
  %v885 = vlaneseq
  %v886 = vshrl.u32 %v885, 7
  %v887 = vsub.s32 2, %v886
  %v888 = vrot.slane %v875, %v887
  %v889 = vlaneseq
  %v890 = vshrl.u32 %v889, 7
  %v891 = vsub.s32 3, %v890
  %v892 = vrot.slane %v875, %v891
  %v897 = vadd.f32 %v871, %v880
  %v898 = vadd.f32 %v872, %v884
  %v899 = vadd.f32 %v873, %v888
  %v900 = vadd.f32 %v874, %v892
  %v901 = vmax.f32 %v897, 0.0
  %v902 = vmax.f32 %v898, 0.0
  %v903 = vmax.f32 %v899, 0.0
  %v904 = vmax.f32 %v900, 0.0
  %v905 = vld [vmem:[%s3] sm:$0xff]
  %v906 = vld [vmem:[%s3 + $0x8] sm:$0xff]
  %v907 = vld [vmem:[%s3 + $0x10] sm:$0xff]
  %v908 = vld [vmem:[%s3 + $0x18] sm:$0xff]
  %v909 = vld [vmem:[%s3 + $0x20] sm:$0xff]
  %v910 = vld [vmem:[%s3 + $0x28] sm:$0xff]
  %v911 = vld [vmem:[%s3 + $0x30] sm:$0xff]
  %v912 = vld [vmem:[%s3 + $0x38] sm:$0xff]
  %v913 = vld [vmem:[%s3 + $0x40] sm:$0xff]
  %v914 = vld [vmem:[%s3 + $0x48] sm:$0xff]
  %v915 = vld [vmem:[%s3 + $0x50] sm:$0xff]
  %v916 = vld [vmem:[%s3 + $0x58] sm:$0xff]
  %v917 = vld [vmem:[%s3 + $0x60] sm:$0xff]
  %v918 = vld [vmem:[%s3 + $0x68] sm:$0xff]
  %v919 = vld [vmem:[%s3 + $0x70] sm:$0xff]
  %v920 = vld [vmem:[%s3 + $0x78] sm:$0xff]
  %v921 = vld [vmem:[%s3 + $0x80] sm:$0xff]
  %v922 = vld [vmem:[%s3 + $0x88] sm:$0xff]
  %v923 = vld [vmem:[%s3 + $0x90] sm:$0xff]
  %v924 = vld [vmem:[%s3 + $0x98] sm:$0xff]
  %v925 = vld [vmem:[%s3 + $0xa0] sm:$0xff]
  %v926 = vld [vmem:[%s3 + $0xa8] sm:$0xff]
  %v927 = vld [vmem:[%s3 + $0xb0] sm:$0xff]
  %v928 = vld [vmem:[%s3 + $0xb8] sm:$0xff]
  %v929 = vld [vmem:[%s3 + $0xc0] sm:$0xff]
  %v930 = vld [vmem:[%s3 + $0xc8] sm:$0xff]
  %v931 = vld [vmem:[%s3 + $0xd0] sm:$0xff]
  %v932 = vld [vmem:[%s3 + $0xd8] sm:$0xff]
  %v933 = vld [vmem:[%s3 + $0xe0] sm:$0xff]
  %v934 = vld [vmem:[%s3 + $0xe8] sm:$0xff]
  %v935 = vld [vmem:[%s3 + $0xf0] sm:$0xff]
  %v936 = vld [vmem:[%s3 + $0xf8] sm:$0xff]
  %v937 = vld [vmem:[%s3 + $0x100] sm:$0xff]
  %v938 = vld [vmem:[%s3 + $0x108] sm:$0xff]
  %v939 = vld [vmem:[%s3 + $0x110] sm:$0xff]
  %v940 = vld [vmem:[%s3 + $0x118] sm:$0xff]
  %v941 = vld [vmem:[%s3 + $0x120] sm:$0xff]
  %v942 = vld [vmem:[%s3 + $0x128] sm:$0xff]
  %v943 = vld [vmem:[%s3 + $0x130] sm:$0xff]
  %v944 = vld [vmem:[%s3 + $0x138] sm:$0xff]
  %v945 = vld [vmem:[%s3 + $0x140] sm:$0xff]
  %v946 = vld [vmem:[%s3 + $0x148] sm:$0xff]
  %v947 = vld [vmem:[%s3 + $0x150] sm:$0xff]
  %v948 = vld [vmem:[%s3 + $0x158] sm:$0xff]
  %v949 = vld [vmem:[%s3 + $0x160] sm:$0xff]
  %v950 = vld [vmem:[%s3 + $0x168] sm:$0xff]
  %v951 = vld [vmem:[%s3 + $0x170] sm:$0xff]
  %v952 = vld [vmem:[%s3 + $0x178] sm:$0xff]
  %v953 = vld [vmem:[%s3 + $0x180] sm:$0xff]
  %v954 = vld [vmem:[%s3 + $0x188] sm:$0xff]
  %v955 = vld [vmem:[%s3 + $0x190] sm:$0xff]
  %v956 = vld [vmem:[%s3 + $0x198] sm:$0xff]
  %v957 = vld [vmem:[%s3 + $0x1a0] sm:$0xff]
  %v958 = vld [vmem:[%s3 + $0x1a8] sm:$0xff]
  %v959 = vld [vmem:[%s3 + $0x1b0] sm:$0xff]
  %v960 = vld [vmem:[%s3 + $0x1b8] sm:$0xff]
  %v961 = vld [vmem:[%s3 + $0x1c0] sm:$0xff]
  %v962 = vld [vmem:[%s3 + $0x1c8] sm:$0xff]
  %v963 = vld [vmem:[%s3 + $0x1d0] sm:$0xff]
  %v964 = vld [vmem:[%s3 + $0x1d8] sm:$0xff]
  %v965 = vld [vmem:[%s3 + $0x1e0] sm:$0xff]
  %v966 = vld [vmem:[%s3 + $0x1e8] sm:$0xff]
  %v967 = vld [vmem:[%s3 + $0x1f0] sm:$0xff]
  %v968 = vld [vmem:[%s3 + $0x1f8] sm:$0xff]
  %v969 = vld [vmem:[%s3 + $0x200] sm:$0xff]
  %v970 = vld [vmem:[%s3 + $0x208] sm:$0xff]
  %v971 = vld [vmem:[%s3 + $0x210] sm:$0xff]
  %v972 = vld [vmem:[%s3 + $0x218] sm:$0xff]
  %v973 = vld [vmem:[%s3 + $0x220] sm:$0xff]
  %v974 = vld [vmem:[%s3 + $0x228] sm:$0xff]
  %v975 = vld [vmem:[%s3 + $0x230] sm:$0xff]
  %v976 = vld [vmem:[%s3 + $0x238] sm:$0xff]
  %v977 = vld [vmem:[%s3 + $0x240] sm:$0xff]
  %v978 = vld [vmem:[%s3 + $0x248] sm:$0xff]
  %v979 = vld [vmem:[%s3 + $0x250] sm:$0xff]
  %v980 = vld [vmem:[%s3 + $0x258] sm:$0xff]
  %v981 = vld [vmem:[%s3 + $0x260] sm:$0xff]
  %v982 = vld [vmem:[%s3 + $0x268] sm:$0xff]
  %v983 = vld [vmem:[%s3 + $0x270] sm:$0xff]
  %v984 = vld [vmem:[%s3 + $0x278] sm:$0xff]
  %v985 = vld [vmem:[%s3 + $0x280] sm:$0xff]
  %v986 = vld [vmem:[%s3 + $0x288] sm:$0xff]
  %v987 = vld [vmem:[%s3 + $0x290] sm:$0xff]
  %v988 = vld [vmem:[%s3 + $0x298] sm:$0xff]
  %v989 = vld [vmem:[%s3 + $0x2a0] sm:$0xff]
  %v990 = vld [vmem:[%s3 + $0x2a8] sm:$0xff]
  %v991 = vld [vmem:[%s3 + $0x2b0] sm:$0xff]
  %v992 = vld [vmem:[%s3 + $0x2b8] sm:$0xff]
  %v993 = vld [vmem:[%s3 + $0x2c0] sm:$0xff]
  %v994 = vld [vmem:[%s3 + $0x2c8] sm:$0xff]
  %v995 = vld [vmem:[%s3 + $0x2d0] sm:$0xff]
  %v996 = vld [vmem:[%s3 + $0x2d8] sm:$0xff]
  %v997 = vld [vmem:[%s3 + $0x2e0] sm:$0xff]
  %v998 = vld [vmem:[%s3 + $0x2e8] sm:$0xff]
  %v999 = vld [vmem:[%s3 + $0x2f0] sm:$0xff]
  %v1000 = vld [vmem:[%s3 + $0x2f8] sm:$0xff]
  %v1001 = vld [vmem:[%s3 + $0x300] sm:$0xff]
  %v1002 = vld [vmem:[%s3 + $0x308] sm:$0xff]
  %v1003 = vld [vmem:[%s3 + $0x310] sm:$0xff]
  %v1004 = vld [vmem:[%s3 + $0x318] sm:$0xff]
  %v1005 = vld [vmem:[%s3 + $0x320] sm:$0xff]
  %v1006 = vld [vmem:[%s3 + $0x328] sm:$0xff]
  %v1007 = vld [vmem:[%s3 + $0x330] sm:$0xff]
  %v1008 = vld [vmem:[%s3 + $0x338] sm:$0xff]
  %v1009 = vld [vmem:[%s3 + $0x340] sm:$0xff]
  %v1010 = vld [vmem:[%s3 + $0x348] sm:$0xff]
  %v1011 = vld [vmem:[%s3 + $0x350] sm:$0xff]
  %v1012 = vld [vmem:[%s3 + $0x358] sm:$0xff]
  %v1013 = vld [vmem:[%s3 + $0x360] sm:$0xff]
  %v1014 = vld [vmem:[%s3 + $0x368] sm:$0xff]
  %v1015 = vld [vmem:[%s3 + $0x370] sm:$0xff]
  %v1016 = vld [vmem:[%s3 + $0x378] sm:$0xff]
  %v1017 = vld [vmem:[%s3 + $0x380] sm:$0xff]
  %v1018 = vld [vmem:[%s3 + $0x388] sm:$0xff]
  %v1019 = vld [vmem:[%s3 + $0x390] sm:$0xff]
  %v1020 = vld [vmem:[%s3 + $0x398] sm:$0xff]
  %v1021 = vld [vmem:[%s3 + $0x3a0] sm:$0xff]
  %v1022 = vld [vmem:[%s3 + $0x3a8] sm:$0xff]
  %v1023 = vld [vmem:[%s3 + $0x3b0] sm:$0xff]
  %v1024 = vld [vmem:[%s3 + $0x3b8] sm:$0xff]
  %v1025 = vld [vmem:[%s3 + $0x3c0] sm:$0xff]
  %v1026 = vld [vmem:[%s3 + $0x3c8] sm:$0xff]
  %v1027 = vld [vmem:[%s3 + $0x3d0] sm:$0xff]
  %v1028 = vld [vmem:[%s3 + $0x3d8] sm:$0xff]
  %v1029 = vld [vmem:[%s3 + $0x3e0] sm:$0xff]
  %v1030 = vld [vmem:[%s3 + $0x3e8] sm:$0xff]
  %v1031 = vld [vmem:[%s3 + $0x3f0] sm:$0xff]
  %v1032 = vld [vmem:[%s3 + $0x3f8] sm:$0xff]
  %1033 = vmatprep.subr.mxu0 %v936
  %1034 = vmatpush1.msra.mxu0 %v935
  %1035 = vmatprep.subr.mxu0 %v934
  %1036 = vmatpush1.msra.mxu0 %v933
  %1037 = vmatprep.subr.mxu0 %v932
  %1038 = vmatpush1.msra.mxu0 %v931
  %1039 = vmatprep.subr.mxu0 %v930
  %1040 = vmatpush1.msra.mxu0 %v929
  %1041 = vmatprep.subr.mxu0 %v928
  %1042 = vmatpush1.msra.mxu0 %v927
  %1043 = vmatprep.subr.mxu0 %v926
  %1044 = vmatpush1.msra.mxu0 %v925
  %1045 = vmatprep.subr.mxu0 %v924
  %1046 = vmatpush1.msra.mxu0 %v923
  %1047 = vmatprep.subr.mxu0 %v922
  %1048 = vmatpush1.msra.mxu0 %v921
  %1049 = vmatprep.subr.mxu0 %v920
  %1050 = vmatpush1.msra.mxu0 %v919
  %1051 = vmatprep.subr.mxu0 %v918
  %1052 = vmatpush1.msra.mxu0 %v917
  %1053 = vmatprep.subr.mxu0 %v916
  %1054 = vmatpush1.msra.mxu0 %v915
  %1055 = vmatprep.subr.mxu0 %v914
  %1056 = vmatpush1.msra.mxu0 %v913
  %1057 = vmatprep.subr.mxu0 %v912
  %1058 = vmatpush1.msra.mxu0 %v911
  %1059 = vmatprep.subr.mxu0 %v910
  %1060 = vmatpush1.msra.mxu0 %v909
  %1061 = vmatprep.subr.mxu0 %v908
  %1062 = vmatpush1.msra.mxu0 %v907
  %1063 = vmatprep.subr.mxu0 %v906
  %1064 = vmatpush1.msra.mxu0 %v905
  %1065 = vmatprep.subr.mxu0 %v968
  %1066 = vmatpush2.msra.mxu0 %v967
  %1067 = vmatprep.subr.mxu0 %v966
  %1068 = vmatpush2.msra.mxu0 %v965
  %1069 = vmatprep.subr.mxu0 %v964
  %1070 = vmatpush2.msra.mxu0 %v963
  %1071 = vmatprep.subr.mxu0 %v962
  %1072 = vmatpush2.msra.mxu0 %v961
  %1073 = vmatprep.subr.mxu0 %v960
  %1074 = vmatpush2.msra.mxu0 %v959
  %1075 = vmatprep.subr.mxu0 %v958
  %1076 = vmatpush2.msra.mxu0 %v957
  %1077 = vmatprep.subr.mxu0 %v956
  %1078 = vmatpush2.msra.mxu0 %v955
  %1079 = vmatprep.subr.mxu0 %v954
  %1080 = vmatpush2.msra.mxu0 %v953
  %1081 = vmatprep.subr.mxu0 %v952
  %1082 = vmatpush2.msra.mxu0 %v951
  %1083 = vmatprep.subr.mxu0 %v950
  %1084 = vmatpush2.msra.mxu0 %v949
  %1085 = vmatprep.subr.mxu0 %v948
  %1086 = vmatpush2.msra.mxu0 %v947
  %1087 = vmatprep.subr.mxu0 %v946
  %1088 = vmatpush2.msra.mxu0 %v945
  %1089 = vmatprep.subr.mxu0 %v944
  %1090 = vmatpush2.msra.mxu0 %v943
  %1091 = vmatprep.subr.mxu0 %v942
  %1092 = vmatpush2.msra.mxu0 %v941
  %1093 = vmatprep.subr.mxu0 %v940
  %1094 = vmatpush2.msra.mxu0 %v939
  %1095 = vmatprep.subr.mxu0 %v938
  %1096 = vmatpush2.msra.mxu0 %v937
  %1097 = vmatprep.mubr.f32.mxu0 %v902
  %1098 = vmatmul.mubr.f32.gmra.mxu0 %v901
  %v1099 = vpop.f32.mrf.mxu0
  %v1100 = vadd.f32 0.0, %v1099
  %v1101 = vpop.f32.mrf.mxu0
  %v1102 = vadd.f32 0.0, %v1101
  %1103 = vdwg.mxu0
  %1104 = vmatprep.subr.mxu0 %v1000
  %1105 = vmatpush1.msra.mxu0 %v999
  %1106 = vmatprep.subr.mxu0 %v998
  %1107 = vmatpush1.msra.mxu0 %v997
  %1108 = vmatprep.subr.mxu0 %v996
  %1109 = vmatpush1.msra.mxu0 %v995
  %1110 = vmatprep.subr.mxu0 %v994
  %1111 = vmatpush1.msra.mxu0 %v993
  %1112 = vmatprep.subr.mxu0 %v992
  %1113 = vmatpush1.msra.mxu0 %v991
  %1114 = vmatprep.subr.mxu0 %v990
  %1115 = vmatpush1.msra.mxu0 %v989
  %1116 = vmatprep.subr.mxu0 %v988
  %1117 = vmatpush1.msra.mxu0 %v987
  %1118 = vmatprep.subr.mxu0 %v986
  %1119 = vmatpush1.msra.mxu0 %v985
  %1120 = vmatprep.subr.mxu0 %v984
  %1121 = vmatpush1.msra.mxu0 %v983
  %1122 = vmatprep.subr.mxu0 %v982
  %1123 = vmatpush1.msra.mxu0 %v981
  %1124 = vmatprep.subr.mxu0 %v980
  %1125 = vmatpush1.msra.mxu0 %v979
  %1126 = vmatprep.subr.mxu0 %v978
  %1127 = vmatpush1.msra.mxu0 %v977
  %1128 = vmatprep.subr.mxu0 %v976
  %1129 = vmatpush1.msra.mxu0 %v975
  %1130 = vmatprep.subr.mxu0 %v974
  %1131 = vmatpush1.msra.mxu0 %v973
  %1132 = vmatprep.subr.mxu0 %v972
  %1133 = vmatpush1.msra.mxu0 %v971
  %1134 = vmatprep.subr.mxu0 %v970
  %1135 = vmatpush1.msra.mxu0 %v969
  %1136 = vmatprep.subr.mxu0 %v1032
  %1137 = vmatpush2.msra.mxu0 %v1031
  %1138 = vmatprep.subr.mxu0 %v1030
  %1139 = vmatpush2.msra.mxu0 %v1029
  %1140 = vmatprep.subr.mxu0 %v1028
  %1141 = vmatpush2.msra.mxu0 %v1027
  %1142 = vmatprep.subr.mxu0 %v1026
  %1143 = vmatpush2.msra.mxu0 %v1025
  %1144 = vmatprep.subr.mxu0 %v1024
  %1145 = vmatpush2.msra.mxu0 %v1023
  %1146 = vmatprep.subr.mxu0 %v1022
  %1147 = vmatpush2.msra.mxu0 %v1021
  %1148 = vmatprep.subr.mxu0 %v1020
  %1149 = vmatpush2.msra.mxu0 %v1019
  %1150 = vmatprep.subr.mxu0 %v1018
  %1151 = vmatpush2.msra.mxu0 %v1017
  %1152 = vmatprep.subr.mxu0 %v1016
  %1153 = vmatpush2.msra.mxu0 %v1015
  %1154 = vmatprep.subr.mxu0 %v1014
  %1155 = vmatpush2.msra.mxu0 %v1013
  %1156 = vmatprep.subr.mxu0 %v1012
  %1157 = vmatpush2.msra.mxu0 %v1011
  %1158 = vmatprep.subr.mxu0 %v1010
  %1159 = vmatpush2.msra.mxu0 %v1009
  %1160 = vmatprep.subr.mxu0 %v1008
  %1161 = vmatpush2.msra.mxu0 %v1007
  %1162 = vmatprep.subr.mxu0 %v1006
  %1163 = vmatpush2.msra.mxu0 %v1005
  %1164 = vmatprep.subr.mxu0 %v1004
  %1165 = vmatpush2.msra.mxu0 %v1003
  %1166 = vmatprep.subr.mxu0 %v1002
  %1167 = vmatpush2.msra.mxu0 %v1001
  %1168 = vmatprep.mubr.f32.mxu0 %v904
  %1169 = vmatmul.mubr.f32.gmra.mxu0 %v903
  %v1170 = vpop.f32.mrf.mxu0
  %v1171 = vadd.f32 %v1100, %v1170
  %v1172 = vpop.f32.mrf.mxu0
  %v1173 = vadd.f32 %v1102, %v1172
  %1174 = vdwg.mxu0
  %1176 = vrot.lane.b32.xlu0 %v1171, 64
  %v1177 = vpop.permute.xlu0 %1176
  %v1179 = vmax.f32 %v1171, %v1177
  %1181 = vrot.lane.b32.xlu0 %v1173, 64
  %v1182 = vpop.permute.xlu0 %1181
  %v1184 = vmax.f32 %v1173, %v1182
  %v1185 = vmax.f32 %v1179, %v1184
  %v1186 = vld [vmem:[%s4] sm:$0x1]
  %v1188 = vlaneseq
  %v1189 = vshrl.u32 %v1188, 7
  %v1190 = vsub.s32 0, %v1189
  %v1191 = vrot.slane %v1186, %v1190
  %v1193 = vadd.f32 %v1185, %v1191
  %v1194 = vmax.f32 %v1193, 0.0
  %v1195 = vld [vmem:[%s5] sm:$0xff]
  %v1196 = vld [vmem:[%s5 + $0x8] sm:$0xff]
  %v1197 = vld [vmem:[%s5 + $0x10] sm:$0xff]
  %v1198 = vld [vmem:[%s5 + $0x18] sm:$0xff]
  %v1199 = vld [vmem:[%s5 + $0x20] sm:$0xff]
  %v1200 = vld [vmem:[%s5 + $0x28] sm:$0xff]
  %v1201 = vld [vmem:[%s5 + $0x30] sm:$0xff]
  %v1202 = vld [vmem:[%s5 + $0x38] sm:$0xff]
  %v1203 = vld [vmem:[%s6] sm:$0x1]
  %v1205 = vlaneseq
  %v1206 = vshrl.u32 %v1205, 7
  %v1207 = vsub.s32 0, %v1206
  %v1208 = vrot.slane %v1203, %v1207
  %vm1210 = vcmask 523264
  %v1212 = vsel %vm1210, %v1194, 0
  %1214 = vmatprep.subr.mxu0 0.0
  %1215 = vmatpush1.msra.mxu0 0.0
  %1216 = vmatprep.subr.mxu0 0.0
  %1217 = vmatpush1.msra.mxu0 0.0
  %1218 = vmatprep.subr.mxu0 0.0
  %1219 = vmatpush1.msra.mxu0 0.0
  %1220 = vmatprep.subr.mxu0 0.0
  %1221 = vmatpush1.msra.mxu0 0.0
  %1222 = vmatprep.subr.mxu0 0.0
  %1223 = vmatpush1.msra.mxu0 0.0
  %1224 = vmatprep.subr.mxu0 0.0
  %1225 = vmatpush1.msra.mxu0 0.0
  %1226 = vmatprep.subr.mxu0 0.0
  %1227 = vmatpush1.msra.mxu0 0.0
  %1228 = vmatprep.subr.mxu0 0.0
  %1229 = vmatpush1.msra.mxu0 0.0
  %1230 = vmatprep.subr.mxu0 0.0
  %1231 = vmatpush1.msra.mxu0 %v1202
  %1232 = vmatprep.subr.mxu0 0.0
  %1233 = vmatpush1.msra.mxu0 %v1201
  %1234 = vmatprep.subr.mxu0 0.0
  %1235 = vmatpush1.msra.mxu0 %v1200
  %1236 = vmatprep.subr.mxu0 0.0
  %1237 = vmatpush1.msra.mxu0 %v1199
  %1238 = vmatprep.subr.mxu0 0.0
  %1239 = vmatpush1.msra.mxu0 %v1198
  %1240 = vmatprep.subr.mxu0 0.0
  %1241 = vmatpush1.msra.mxu0 %v1197
  %1242 = vmatprep.subr.mxu0 0.0
  %1243 = vmatpush1.msra.mxu0 %v1196
  %1244 = vmatprep.subr.mxu0 0.0
  %1245 = vmatpush1.msra.mxu0 %v1195
  %1246 = vmatprep.subr.mxu0 0.0
  %1247 = vmatpush2.msra.mxu0 0.0
  %1248 = vmatprep.subr.mxu0 0.0
  %1249 = vmatpush2.msra.mxu0 0.0
  %1250 = vmatprep.subr.mxu0 0.0
  %1251 = vmatpush2.msra.mxu0 0.0
  %1252 = vmatprep.subr.mxu0 0.0
  %1253 = vmatpush2.msra.mxu0 0.0
  %1254 = vmatprep.subr.mxu0 0.0
  %1255 = vmatpush2.msra.mxu0 0.0
  %1256 = vmatprep.subr.mxu0 0.0
  %1257 = vmatpush2.msra.mxu0 0.0
  %1258 = vmatprep.subr.mxu0 0.0
  %1259 = vmatpush2.msra.mxu0 0.0
  %1260 = vmatprep.subr.mxu0 0.0
  %1261 = vmatpush2.msra.mxu0 0.0
  %1262 = vmatprep.subr.mxu0 0.0
  %1263 = vmatpush2.msra.mxu0 0.0
  %1264 = vmatprep.subr.mxu0 0.0
  %1265 = vmatpush2.msra.mxu0 0.0
  %1266 = vmatprep.subr.mxu0 0.0
  %1267 = vmatpush2.msra.mxu0 0.0
  %1268 = vmatprep.subr.mxu0 0.0
  %1269 = vmatpush2.msra.mxu0 0.0
  %1270 = vmatprep.subr.mxu0 0.0
  %1271 = vmatpush2.msra.mxu0 0.0
  %1272 = vmatprep.subr.mxu0 0.0
  %1273 = vmatpush2.msra.mxu0 0.0
  %1274 = vmatprep.subr.mxu0 0.0
  %1275 = vmatpush2.msra.mxu0 0.0
  %1276 = vmatprep.subr.mxu0 0.0
  %1277 = vmatpush2.msra.mxu0 0.0
  %1278 = vmatprep.mubr.f32.mxu0 0.0
  %1279 = vmatmul.mubr.f32.gmra.mxu0 %v1212
  %v1280 = vpop.f32.mrf.mxu0
  %v1281 = vadd.f32 %v1208, %v1280
  %v1282 = vpop.f32.mrf.mxu0
  %1283 = vdwg.mxu0
  %v1284 = vmax.f32 %v1281, 0.0
  %v1285 = vld [vmem:[%s7] sm:$0xff]
  %v1286 = vld [vmem:[%s7 + $0x8] sm:$0xff]
  %v1287 = vld [vmem:[%s7 + $0x10] sm:$0xff]
  %v1288 = vld [vmem:[%s7 + $0x18] sm:$0xff]
  %v1289 = vld [vmem:[%s7 + $0x20] sm:$0xff]
  %v1290 = vld [vmem:[%s7 + $0x28] sm:$0xff]
  %v1291 = vld [vmem:[%s7 + $0x30] sm:$0xff]
  %v1292 = vld [vmem:[%s7 + $0x38] sm:$0xff]
  %v1293 = vld [vmem:[%s7 + $0x40] sm:$0xff]
  %v1294 = vld [vmem:[%s7 + $0x48] sm:$0xff]
  %v1295 = vld [vmem:[%s7 + $0x50] sm:$0xff]
  %v1296 = vld [vmem:[%s7 + $0x58] sm:$0xff]
  %v1297 = vld [vmem:[%s7 + $0x60] sm:$0xff]
  %v1298 = vld [vmem:[%s7 + $0x68] sm:$0xff]
  %v1299 = vld [vmem:[%s7 + $0x70] sm:$0xff]
  %v1300 = vld [vmem:[%s7 + $0x78] sm:$0xff]
  %v1301 = vld [vmem:[%s8] sm:$0x1]
  %v1303 = vlaneseq
  %v1304 = vshrl.u32 %v1303, 7
  %v1305 = vsub.s32 0, %v1304
  %v1306 = vrot.slane %v1301, %v1305
  %1308 = vmatprep.subr.mxu0 0.0
  %1309 = vmatpush1.msra.mxu0 %v1300
  %1310 = vmatprep.subr.mxu0 0.0
  %1311 = vmatpush1.msra.mxu0 %v1299
  %1312 = vmatprep.subr.mxu0 0.0
  %1313 = vmatpush1.msra.mxu0 %v1298
  %1314 = vmatprep.subr.mxu0 0.0
  %1315 = vmatpush1.msra.mxu0 %v1297
  %1316 = vmatprep.subr.mxu0 0.0
  %1317 = vmatpush1.msra.mxu0 %v1296
  %1318 = vmatprep.subr.mxu0 0.0
  %1319 = vmatpush1.msra.mxu0 %v1295
  %1320 = vmatprep.subr.mxu0 0.0
  %1321 = vmatpush1.msra.mxu0 %v1294
  %1322 = vmatprep.subr.mxu0 0.0
  %1323 = vmatpush1.msra.mxu0 %v1293
  %1324 = vmatprep.subr.mxu0 0.0
  %1325 = vmatpush1.msra.mxu0 %v1292
  %1326 = vmatprep.subr.mxu0 0.0
  %1327 = vmatpush1.msra.mxu0 %v1291
  %1328 = vmatprep.subr.mxu0 0.0
  %1329 = vmatpush1.msra.mxu0 %v1290
  %1330 = vmatprep.subr.mxu0 0.0
  %1331 = vmatpush1.msra.mxu0 %v1289
  %1332 = vmatprep.subr.mxu0 0.0
  %1333 = vmatpush1.msra.mxu0 %v1288
  %1334 = vmatprep.subr.mxu0 0.0
  %1335 = vmatpush1.msra.mxu0 %v1287
  %1336 = vmatprep.subr.mxu0 0.0
  %1337 = vmatpush1.msra.mxu0 %v1286
  %1338 = vmatprep.subr.mxu0 0.0
  %1339 = vmatpush1.msra.mxu0 %v1285
  %1340 = vmatprep.subr.mxu0 0.0
  %1341 = vmatpush2.msra.mxu0 0.0
  %1342 = vmatprep.subr.mxu0 0.0
  %1343 = vmatpush2.msra.mxu0 0.0
  %1344 = vmatprep.subr.mxu0 0.0
  %1345 = vmatpush2.msra.mxu0 0.0
  %1346 = vmatprep.subr.mxu0 0.0
  %1347 = vmatpush2.msra.mxu0 0.0
  %1348 = vmatprep.subr.mxu0 0.0
  %1349 = vmatpush2.msra.mxu0 0.0
  %1350 = vmatprep.subr.mxu0 0.0
  %1351 = vmatpush2.msra.mxu0 0.0
  %1352 = vmatprep.subr.mxu0 0.0
  %1353 = vmatpush2.msra.mxu0 0.0
  %1354 = vmatprep.subr.mxu0 0.0
  %1355 = vmatpush2.msra.mxu0 0.0
  %1356 = vmatprep.subr.mxu0 0.0
  %1357 = vmatpush2.msra.mxu0 0.0
  %1358 = vmatprep.subr.mxu0 0.0
  %1359 = vmatpush2.msra.mxu0 0.0
  %1360 = vmatprep.subr.mxu0 0.0
  %1361 = vmatpush2.msra.mxu0 0.0
  %1362 = vmatprep.subr.mxu0 0.0
  %1363 = vmatpush2.msra.mxu0 0.0
  %1364 = vmatprep.subr.mxu0 0.0
  %1365 = vmatpush2.msra.mxu0 0.0
  %1366 = vmatprep.subr.mxu0 0.0
  %1367 = vmatpush2.msra.mxu0 0.0
  %1368 = vmatprep.subr.mxu0 0.0
  %1369 = vmatpush2.msra.mxu0 0.0
  %1370 = vmatprep.subr.mxu0 0.0
  %1371 = vmatpush2.msra.mxu0 0.0
  %1372 = vmatprep.mubr.f32.mxu0 0.0
  %1373 = vmatmul.mubr.f32.gmra.mxu0 %v1284
  %v1374 = vpop.f32.mrf.mxu0
  %v1375 = vadd.f32 %v1306, %v1374
  %v1376 = vpop.f32.mrf.mxu0
  %1377 = vdwg.mxu0
  %v1378 = vmax.f32 %v1375, 0.0
  %v1379 = vld [vmem:[%s9] sm:$0xff]
  %v1380 = vld [vmem:[%s9 + $0x8] sm:$0xff]
  %v1381 = vld [vmem:[%s9 + $0x10] sm:$0xff]
  %v1382 = vld [vmem:[%s9 + $0x18] sm:$0xff]
  %v1383 = vld [vmem:[%s9 + $0x20] sm:$0xff]
  %v1384 = vld [vmem:[%s9 + $0x28] sm:$0xff]
  %v1385 = vld [vmem:[%s9 + $0x30] sm:$0xff]
  %v1386 = vld [vmem:[%s9 + $0x38] sm:$0xff]
  %v1387 = vld [vmem:[%s9 + $0x40] sm:$0xff]
  %v1388 = vld [vmem:[%s9 + $0x48] sm:$0xff]
  %v1389 = vld [vmem:[%s9 + $0x50] sm:$0xff]
  %v1390 = vld [vmem:[%s9 + $0x58] sm:$0xff]
  %v1391 = vld [vmem:[%s9 + $0x60] sm:$0xff]
  %v1392 = vld [vmem:[%s9 + $0x68] sm:$0xff]
  %v1393 = vld [vmem:[%s9 + $0x70] sm:$0xff]
  %v1394 = vld [vmem:[%s9 + $0x78] sm:$0xff]
  %v1395 = vld [vmem:[%s10] sm:$0x1]
  %v1397 = vlaneseq
  %v1398 = vshrl.u32 %v1397, 7
  %v1399 = vsub.s32 0, %v1398
  %v1400 = vrot.slane %v1395, %v1399
  %1402 = vmatprep.subr.mxu0 0.0
  %1403 = vmatpush1.msra.mxu0 %v1394
  %1404 = vmatprep.subr.mxu0 0.0
  %1405 = vmatpush1.msra.mxu0 %v1393
  %1406 = vmatprep.subr.mxu0 0.0
  %1407 = vmatpush1.msra.mxu0 %v1392
  %1408 = vmatprep.subr.mxu0 0.0
  %1409 = vmatpush1.msra.mxu0 %v1391
  %1410 = vmatprep.subr.mxu0 0.0
  %1411 = vmatpush1.msra.mxu0 %v1390
  %1412 = vmatprep.subr.mxu0 0.0
  %1413 = vmatpush1.msra.mxu0 %v1389
  %1414 = vmatprep.subr.mxu0 0.0
  %1415 = vmatpush1.msra.mxu0 %v1388
  %1416 = vmatprep.subr.mxu0 0.0
  %1417 = vmatpush1.msra.mxu0 %v1387
  %1418 = vmatprep.subr.mxu0 0.0
  %1419 = vmatpush1.msra.mxu0 %v1386
  %1420 = vmatprep.subr.mxu0 0.0
  %1421 = vmatpush1.msra.mxu0 %v1385
  %1422 = vmatprep.subr.mxu0 0.0
  %1423 = vmatpush1.msra.mxu0 %v1384
  %1424 = vmatprep.subr.mxu0 0.0
  %1425 = vmatpush1.msra.mxu0 %v1383
  %1426 = vmatprep.subr.mxu0 0.0
  %1427 = vmatpush1.msra.mxu0 %v1382
  %1428 = vmatprep.subr.mxu0 0.0
  %1429 = vmatpush1.msra.mxu0 %v1381
  %1430 = vmatprep.subr.mxu0 0.0
  %1431 = vmatpush1.msra.mxu0 %v1380
  %1432 = vmatprep.subr.mxu0 0.0
  %1433 = vmatpush1.msra.mxu0 %v1379
  %1434 = vmatprep.subr.mxu0 0.0
  %1435 = vmatpush2.msra.mxu0 0.0
  %1436 = vmatprep.subr.mxu0 0.0
  %1437 = vmatpush2.msra.mxu0 0.0
  %1438 = vmatprep.subr.mxu0 0.0
  %1439 = vmatpush2.msra.mxu0 0.0
  %1440 = vmatprep.subr.mxu0 0.0
  %1441 = vmatpush2.msra.mxu0 0.0
  %1442 = vmatprep.subr.mxu0 0.0
  %1443 = vmatpush2.msra.mxu0 0.0
  %1444 = vmatprep.subr.mxu0 0.0
  %1445 = vmatpush2.msra.mxu0 0.0
  %1446 = vmatprep.subr.mxu0 0.0
  %1447 = vmatpush2.msra.mxu0 0.0
  %1448 = vmatprep.subr.mxu0 0.0
  %1449 = vmatpush2.msra.mxu0 0.0
  %1450 = vmatprep.subr.mxu0 0.0
  %1451 = vmatpush2.msra.mxu0 0.0
  %1452 = vmatprep.subr.mxu0 0.0
  %1453 = vmatpush2.msra.mxu0 0.0
  %1454 = vmatprep.subr.mxu0 0.0
  %1455 = vmatpush2.msra.mxu0 0.0
  %1456 = vmatprep.subr.mxu0 0.0
  %1457 = vmatpush2.msra.mxu0 0.0
  %1458 = vmatprep.subr.mxu0 0.0
  %1459 = vmatpush2.msra.mxu0 0.0
  %1460 = vmatprep.subr.mxu0 0.0
  %1461 = vmatpush2.msra.mxu0 0.0
  %1462 = vmatprep.subr.mxu0 0.0
  %1463 = vmatpush2.msra.mxu0 0.0
  %1464 = vmatprep.subr.mxu0 0.0
  %1465 = vmatpush2.msra.mxu0 0.0
  %1466 = vmatprep.mubr.f32.mxu0 0.0
  %1467 = vmatmul.mubr.f32.gmra.mxu0 %v1378
  %v1468 = vpop.f32.mrf.mxu0
  %v1469 = vadd.f32 %v1400, %v1468
  %v1470 = vpop.f32.mrf.mxu0
  %1471 = vdwg.mxu0
  %v1472 = vtanh.pop %v1469
  %1473 = vst [vmem:[%s11] sm:$0xff] %v1472
  // Predicated region
  $region46: #{regression_model_forward.1} parent=0 // pred_check
    _
  $region47: #{regression_model_forward.1} parent=0 // pred_check_branch
    %1475 = sbr.rel (0) target = $region49
  $region48: #{regression_model_forward.1} parent=0 // pred_region
    _
  $region49: #{regression_model_forward.1} parent=0 // pred_fallthru
    _
  // Predicated region
  $region50: #{regression_model_forward.1} parent=0 // pred_check
    _
  $region51: #{regression_model_forward.1} parent=0 // pred_check_branch
    %1477 = sbr.rel (0) target = $region53
  $region52: #{regression_model_forward.1} parent=0 // pred_region
    _
  $region53: #{regression_model_forward.1} parent=0 // pred_fallthru
    _

</llo_original>
